<compile_context>
chip_gen: v5e
topology: v5e:2x2
jax: 0.10.0
libtpu: 0.0.40
codegen_flags: <defaults>
</compile_context>

<pallas_src>
import functools

import jax
import jax.numpy as jnp
from jax.experimental import pallas as pl
from jax.experimental.pallas import tpu as pltpu

C_PAD = 128                       # lane-dense padding for every channel dimension
STRIDES = (2, 1, 2, 1, 2)         # synthetic per-stage spatial stride
N_LEVELS = len(STRIDES)


def _make_backbone_kernel(h0, w0, strides):
    """Build the fused 5-level kernel for ONE image (one grid step).

    x_ref   : (h0*w0, C_PAD) f32      input rows (NHWC flattened, channel-padded)
    w_ref   : (10, C_PAD, C_PAD) bf16 folded conv+BN weights [stage0, proc0, stage1, ...]
    b_ref   : (10, 1, C_PAD) f32      folded conv+BN biases
    f0..f4  : per-level FeatureProcessor outputs (rows_l, C_PAD) bf16
    src_ref : VMEM scratch to spill the carried activation before a strided read
    ds_ref  : VMEM scratch holding the downsampled activation rows
    """

    def kernel(x_ref, w_ref, b_ref, f0, f1, f2, f3, f4, src_ref, ds_ref):
        feat_refs = (f0, f1, f2, f3, f4)
        h, w = h0, w0
        act = None                                        # f32 value carried level-to-level
        for l, stride in enumerate(strides):
            if stride == 1 and l == 0:
                act = x_ref[...]
            if stride == 2:
                # In-VMEM 2x spatial downsample: keep even (h, w) positions using
                # strided sublane reads; nothing round-trips through HBM.
                if l == 0:
                    src = x_ref
                else:
                    src_ref[pl.ds(0, h * w), :] = act     # spill carried value to scratch
                    src = src_ref
                h2, w2 = h // 2, w // 2
                for i in range(h2):                       # static unroll (<= 8 iterations)
                    ds_ref[pl.ds(i * w2, w2), :] = src[pl.ds(2 * i * w, w2, stride=2), :]
                h, w = h2, w2
                act = ds_ref[pl.ds(0, h * w), :]
            # Stage: folded 1x1 conv + BN (MXU matmul) + SiLU (VPU/EUP).
            s = jnp.dot(act.astype(jnp.bfloat16), w_ref[2 * l],
                        preferred_element_type=jnp.float32)
            s = s + b_ref[2 * l]
            s = s * jax.nn.sigmoid(s)
            # FeatureProcessor: folded 1x1 conv + BN + SiLU.
            p = jnp.dot(s.astype(jnp.bfloat16), w_ref[2 * l + 1],
                        preferred_element_type=jnp.float32)
            p = p + b_ref[2 * l + 1]
            p = p * jax.nn.sigmoid(p)
            feat_refs[l][...] = p.astype(feat_refs[l].dtype)
            act = s                                       # carry stage output (last one is DCE'd)

    return kernel


def _backbone_forward(weights, biases, x_nchw, *, width):
    n, cin, h0, w0 = x_nchw.shape
    # One layout op at the input: NCHW -> NHWC rows, zero-pad channels to 128 lanes.
    # TODO(synk): at real resolutions feed unpadded (rows, cin) and zero-extend in-kernel
    # instead of materialising the lane-padded input copy in HBM.
    x = jnp.transpose(x_nchw, (0, 2, 3, 1)).astype(jnp.float32)
    x = jnp.pad(x, ((0, 0), (0, 0), (0, 0), (0, C_PAD - cin)))
    x = x.reshape(n, h0 * w0, C_PAD)

    rows, hs, ws = [], [], []
    h, w = h0, w0
    for s in STRIDES:
        h //= s
        w //= s
        rows.append(h * w)
        hs.append(h)
        ws.append(w)

    feats = pl.pallas_call(
        _make_backbone_kernel(h0, w0, STRIDES),
        out_shape=tuple(jax.ShapeDtypeStruct((n, r, C_PAD), jnp.bfloat16) for r in rows),
        grid_spec=pltpu.PrefetchScalarGridSpec(
            num_scalar_prefetch=0,
            grid=(n,),                                          # one grid step per image
            in_specs=[
                pl.BlockSpec((None, h0 * w0, C_PAD), lambda i: (i, 0, 0)),        # image rows
                pl.BlockSpec((2 * N_LEVELS, C_PAD, C_PAD), lambda i: (0, 0, 0)),  # weights (resident)
                pl.BlockSpec((2 * N_LEVELS, 1, C_PAD), lambda i: (0, 0, 0)),      # biases (resident)
            ],
            out_specs=tuple(pl.BlockSpec((None, r, C_PAD), lambda i: (i, 0, 0))
                            for r in rows),
            scratch_shapes=[
                pltpu.VMEM((h0 * w0 // 4, C_PAD), jnp.float32),   # activation spill buffer
                pltpu.VMEM((h0 * w0 // 4, C_PAD), jnp.float32),   # downsample buffer
            ],
        ),
        compiler_params=pltpu.CompilerParams(
            dimension_semantics=("parallel",)),                  # images -> cores (v7x megacore)
    )(x, weights, biases)

    # Match the reference module's output format: NCHW, `width` channels, float32.
    outs = []
    for l in range(N_LEVELS):
        f = feats[l].reshape(n, hs[l], ws[l], C_PAD)[..., :width]
        outs.append(jnp.transpose(f, (0, 3, 1, 2)).astype(jnp.float32))
    return outs


def make_conv_bn_params(key, cin, cout, eps=1e-5):
    k1, k2, k3, k4, k5, k6 = jax.random.split(key, 6)
    return {
        "w": 0.1 * jax.random.normal(k1, (cout, cin, 1, 1), jnp.float32),
        "b": 0.1 * jax.random.normal(k2, (cout,), jnp.float32),
        "gamma": 1.0 + 0.1 * jax.random.normal(k3, (cout,), jnp.float32),
        "beta": 0.1 * jax.random.normal(k4, (cout,), jnp.float32),
        "mean": 0.1 * jax.random.normal(k5, (cout,), jnp.float32),
        "var": jax.random.uniform(k6, (cout,), jnp.float32, 0.5, 1.5),
        "eps": eps,
    }


def fold_bn_pad(p, cin, cout):
    """Fold eval-mode BN + conv bias into the conv weights; pad to C_PAD lanes."""
    inv_std = 1.0 / jnp.sqrt(p["var"] + p["eps"])
    scale = p["gamma"] * inv_std                                  # (cout,)
    bias = p["beta"] + (p["b"] - p["mean"]) * scale               # (cout,)
    w = p["w"].reshape(cout, cin) * scale[:, None]                # BN scale folded in
    wmat = jnp.zeros((C_PAD, C_PAD), jnp.float32)
    wmat = wmat.at[:cin, :cout].set(w.T)                          # (Cin, Cout), zero-padded
    bvec = jnp.zeros((1, C_PAD), jnp.float32).at[0, :cout].set(bias)
    return wmat.astype(jnp.bfloat16), bvec


class EfficientNetBackbonePallas:
    """JAX/Pallas re-implementation of EfficientNetBackbone.forward (eval mode).

    Returns the 5 FeatureProcessor outputs (`width` channels each, NCHW float32),
    matching the reference forward's `features` list.  Stages are synthetic
    (stride-subsample + folded 1x1 conv/BN/SiLU) since the pretrained B4 weights
    are not available in-script.
    """

    def __init__(self, key, phi=4, in_channels=4, base_width=16, base_depth=3):
        # CompoundScaler.scale(phi) with a small base width for synthetic shapes.
        alpha, beta = 1.2, 1.1
        self.width = int(base_width * alpha ** phi)
        self.depth = max(3, int(base_depth * beta ** phi))

        stage_channels = [8, 16, 24, 32, 48]
        keys = jax.random.split(key, 2 * N_LEVELS)
        w_list, b_list = [], []
        cin = in_channels
        for i, c in enumerate(stage_channels):
            stage_p = make_conv_bn_params(keys[2 * i], cin, c)
            proc_p = make_conv_bn_params(keys[2 * i + 1], c, self.width)
            ws, bs = fold_bn_pad(stage_p, cin, c)
            wp, bp = fold_bn_pad(proc_p, c, self.width)
            w_list += [ws, wp]
            b_list += [bs, bp]
            cin = c
        self.weights = jnp.stack(w_list)      # (10, 128, 128) bf16, VMEM-resident in kernel
        self.biases = jnp.stack(b_list)       # (10, 1, 128) f32
        self._forward = jax.jit(functools.partial(_backbone_forward, width=self.width))

    def __call__(self, x):
        return self._forward(self.weights, self.biases, x)


if __name__ == "__main__":
    key = jax.random.PRNGKey(0)
    pkey, xkey = jax.random.split(key)

    model = EfficientNetBackbonePallas(pkey, phi=4, in_channels=4)
    x = jax.random.normal(xkey, (2, 4, 16, 16), jnp.float32)  # NCHW

    feats = model(x)
    for f in feats:
        jax.block_until_ready(f)

    assert len(feats) == 5
    assert feats[0].shape == (2, model.width, 8, 8)
    assert feats[1].shape == (2, model.width, 8, 8)
    assert feats[2].shape == (2, model.width, 4, 4)
    assert feats[3].shape == (2, model.width, 4, 4)
    assert feats[4].shape == (2, model.width, 2, 2)
    print("KERNEL_OK")
</pallas_src>

<mosaic_0001>
module attributes {stable_mosaic.version = 11 : i64} {
  func.func @kernel(%arg0: i32, %arg1: memref<1x256x128xf32, #tpu.memory_space<vmem>>, %arg2: memref<10x128x128xbf16, #tpu.memory_space<vmem>>, %arg3: memref<10x1x128xf32, #tpu.memory_space<vmem>>, %arg4: memref<1x64x128xbf16, #tpu.memory_space<vmem>>, %arg5: memref<1x64x128xbf16, #tpu.memory_space<vmem>>, %arg6: memref<1x16x128xbf16, #tpu.memory_space<vmem>>, %arg7: memref<1x16x128xbf16, #tpu.memory_space<vmem>>, %arg8: memref<1x4x128xbf16, #tpu.memory_space<vmem>>, %arg9: memref<64x128xf32, #tpu.memory_space<vmem>>, %arg10: memref<64x128xf32, #tpu.memory_space<vmem>>) attributes {dimension_semantics = [#tpu.dimension_semantics<parallel>], iteration_bounds = array<i64: 2>, scalar_prefetch = 0 : i64, scratch_operands = 2 : i64, tpu.core_type = #tpu.core_type<tc>, window_params = [{transform_indices = @transform_0, window_bounds = array<i64: 1, 256, 128>}, {pipeline_mode = #tpu.pipeline_mode<synchronous>, transform_indices = @transform_1, window_bounds = array<i64: 10, 128, 128>}, {pipeline_mode = #tpu.pipeline_mode<synchronous>, transform_indices = @transform_2, window_bounds = array<i64: 10, 1, 128>}, {transform_indices = @transform_3, window_bounds = array<i64: 1, 64, 128>}, {transform_indices = @transform_4, window_bounds = array<i64: 1, 64, 128>}, {transform_indices = @transform_5, window_bounds = array<i64: 1, 16, 128>}, {transform_indices = @transform_6, window_bounds = array<i64: 1, 16, 128>}, {transform_indices = @transform_7, window_bounds = array<i64: 1, 4, 128>}]} {
    %c0 = arith.constant 0 : index
    %c0_0 = arith.constant 0 : index
    %c0_1 = arith.constant 0 : index
    %0 = tpu.strided_load %arg1[%c0, %c0_0, %c0_1] {strides = array<i32: 1, 2, 1>} : memref<1x256x128xf32, #tpu.memory_space<vmem>>, vector<1x8x128xf32>
    %1 = vector.shape_cast %0 : vector<1x8x128xf32> to vector<8x128xf32>
    %c0_2 = arith.constant 0 : index
    %c0_3 = arith.constant 0 : index
    %2 = vector.load %arg10[%c0_2, %c0_3] : memref<64x128xf32, #tpu.memory_space<vmem>>, vector<8x128xf32>
    tpu.vector_store %arg10[%c0_2, %c0_3], %1 {strides = array<i32>} : memref<64x128xf32, #tpu.memory_space<vmem>>, vector<8x128xf32>,
    %c0_4 = arith.constant 0 : index
    %c32 = arith.constant 32 : index
    %c0_5 = arith.constant 0 : index
    %3 = tpu.strided_load %arg1[%c0_4, %c32, %c0_5] {strides = array<i32: 1, 2, 1>} : memref<1x256x128xf32, #tpu.memory_space<vmem>>, vector<1x8x128xf32>
    %4 = vector.shape_cast %3 : vector<1x8x128xf32> to vector<8x128xf32>
    %c8 = arith.constant 8 : index
    %c0_6 = arith.constant 0 : index
    %5 = vector.load %arg10[%c8, %c0_6] : memref<64x128xf32, #tpu.memory_space<vmem>>, vector<8x128xf32>
    tpu.vector_store %arg10[%c8, %c0_6], %4 {strides = array<i32>} : memref<64x128xf32, #tpu.memory_space<vmem>>, vector<8x128xf32>,
    %c0_7 = arith.constant 0 : index
    %c64 = arith.constant 64 : index
    %c0_8 = arith.constant 0 : index
    %6 = tpu.strided_load %arg1[%c0_7, %c64, %c0_8] {strides = array<i32: 1, 2, 1>} : memref<1x256x128xf32, #tpu.memory_space<vmem>>, vector<1x8x128xf32>
    %7 = vector.shape_cast %6 : vector<1x8x128xf32> to vector<8x128xf32>
    %c16 = arith.constant 16 : index
    %c0_9 = arith.constant 0 : index
    %8 = vector.load %arg10[%c16, %c0_9] : memref<64x128xf32, #tpu.memory_space<vmem>>, vector<8x128xf32>
    tpu.vector_store %arg10[%c16, %c0_9], %7 {strides = array<i32>} : memref<64x128xf32, #tpu.memory_space<vmem>>, vector<8x128xf32>,
    %c0_10 = arith.constant 0 : index
    %c96 = arith.constant 96 : index
    %c0_11 = arith.constant 0 : index
    %9 = tpu.strided_load %arg1[%c0_10, %c96, %c0_11] {strides = array<i32: 1, 2, 1>} : memref<1x256x128xf32, #tpu.memory_space<vmem>>, vector<1x8x128xf32>
    %10 = vector.shape_cast %9 : vector<1x8x128xf32> to vector<8x128xf32>
    %c24 = arith.constant 24 : index
    %c0_12 = arith.constant 0 : index
    %11 = vector.load %arg10[%c24, %c0_12] : memref<64x128xf32, #tpu.memory_space<vmem>>, vector<8x128xf32>
    tpu.vector_store %arg10[%c24, %c0_12], %10 {strides = array<i32>} : memref<64x128xf32, #tpu.memory_space<vmem>>, vector<8x128xf32>,
    %c0_13 = arith.constant 0 : index
    %c128 = arith.constant 128 : index
    %c0_14 = arith.constant 0 : index
    %12 = tpu.strided_load %arg1[%c0_13, %c128, %c0_14] {strides = array<i32: 1, 2, 1>} : memref<1x256x128xf32, #tpu.memory_space<vmem>>, vector<1x8x128xf32>
    %13 = vector.shape_cast %12 : vector<1x8x128xf32> to vector<8x128xf32>
    %c32_15 = arith.constant 32 : index
    %c0_16 = arith.constant 0 : index
    %14 = vector.load %arg10[%c32_15, %c0_16] : memref<64x128xf32, #tpu.memory_space<vmem>>, vector<8x128xf32>
    tpu.vector_store %arg10[%c32_15, %c0_16], %13 {strides = array<i32>} : memref<64x128xf32, #tpu.memory_space<vmem>>, vector<8x128xf32>,
    %c0_17 = arith.constant 0 : index
    %c160 = arith.constant 160 : index
    %c0_18 = arith.constant 0 : index
    %15 = tpu.strided_load %arg1[%c0_17, %c160, %c0_18] {strides = array<i32: 1, 2, 1>} : memref<1x256x128xf32, #tpu.memory_space<vmem>>, vector<1x8x128xf32>
    %16 = vector.shape_cast %15 : vector<1x8x128xf32> to vector<8x128xf32>
    %c40 = arith.constant 40 : index
    %c0_19 = arith.constant 0 : index
    %17 = vector.load %arg10[%c40, %c0_19] : memref<64x128xf32, #tpu.memory_space<vmem>>, vector<8x128xf32>
    tpu.vector_store %arg10[%c40, %c0_19], %16 {strides = array<i32>} : memref<64x128xf32, #tpu.memory_space<vmem>>, vector<8x128xf32>,
    %c0_20 = arith.constant 0 : index
    %c192 = arith.constant 192 : index
    %c0_21 = arith.constant 0 : index
    %18 = tpu.strided_load %arg1[%c0_20, %c192, %c0_21] {strides = array<i32: 1, 2, 1>} : memref<1x256x128xf32, #tpu.memory_space<vmem>>, vector<1x8x128xf32>
    %19 = vector.shape_cast %18 : vector<1x8x128xf32> to vector<8x128xf32>
    %c48 = arith.constant 48 : index
    %c0_22 = arith.constant 0 : index
    %20 = vector.load %arg10[%c48, %c0_22] : memref<64x128xf32, #tpu.memory_space<vmem>>, vector<8x128xf32>
    tpu.vector_store %arg10[%c48, %c0_22], %19 {strides = array<i32>} : memref<64x128xf32, #tpu.memory_space<vmem>>, vector<8x128xf32>,
    %c0_23 = arith.constant 0 : index
    %c224 = arith.constant 224 : index
    %c0_24 = arith.constant 0 : index
    %21 = tpu.strided_load %arg1[%c0_23, %c224, %c0_24] {strides = array<i32: 1, 2, 1>} : memref<1x256x128xf32, #tpu.memory_space<vmem>>, vector<1x8x128xf32>
    %22 = vector.shape_cast %21 : vector<1x8x128xf32> to vector<8x128xf32>
    %c56 = arith.constant 56 : index
    %c0_25 = arith.constant 0 : index
    %23 = vector.load %arg10[%c56, %c0_25] : memref<64x128xf32, #tpu.memory_space<vmem>>, vector<8x128xf32>
    tpu.vector_store %arg10[%c56, %c0_25], %22 {strides = array<i32>} : memref<64x128xf32, #tpu.memory_space<vmem>>, vector<8x128xf32>,
    %c0_26 = arith.constant 0 : index
    %c0_27 = arith.constant 0 : index
    %24 = vector.load %arg10[%c0_26, %c0_27] : memref<64x128xf32, #tpu.memory_space<vmem>>, vector<64x128xf32>
    %25 = arith.truncf %24 : vector<64x128xf32> to vector<64x128xbf16>
    %c0_28 = arith.constant 0 : index
    %c0_29 = arith.constant 0 : index
    %c0_30 = arith.constant 0 : index
    %26 = vector.load %arg2[%c0_28, %c0_29, %c0_30] : memref<10x128x128xbf16, #tpu.memory_space<vmem>>, vector<1x128x128xbf16>
    %27 = vector.shape_cast %26 : vector<1x128x128xbf16> to vector<128x128xbf16>
    %cst = arith.constant dense<0.000000e+00> : vector<64x128xf32>
    %28 = tpu.matmul %25, %27, %cst {dimension_numbers = #tpu.dot_dimension_numbers<[1], [0], [0], [1], [0, 0, 1, 1], [], []>} : vector<64x128xbf16>, vector<128x128xbf16>, vector<64x128xf32> -> vector<64x128xf32>
    %c0_31 = arith.constant 0 : index
    %c0_32 = arith.constant 0 : index
    %c0_33 = arith.constant 0 : index
    %29 = vector.load %arg3[%c0_31, %c0_32, %c0_33] : memref<10x1x128xf32, #tpu.memory_space<vmem>>, vector<1x1x128xf32>
    %30 = vector.shape_cast %29 : vector<1x1x128xf32> to vector<1x128xf32>
    %31 = vector.broadcast %30 : vector<1x128xf32> to vector<64x128xf32>
    %32 = arith.addf %28, %31 : vector<64x128xf32>
    %33 = arith.negf %32 : vector<64x128xf32>
    %34 = math.exp %33 : vector<64x128xf32>
    %cst_34 = arith.constant 1.000000e+00 : f32
    %35 = vector.broadcast %cst_34 : f32 to vector<64x128xf32>
    %36 = arith.addf %35, %34 : vector<64x128xf32>
    %37 = arith.divf %35, %36 : vector<64x128xf32>
    %38 = arith.mulf %32, %37 : vector<64x128xf32>
    %39 = arith.truncf %38 : vector<64x128xf32> to vector<64x128xbf16>
    %c1 = arith.constant 1 : index
    %c0_35 = arith.constant 0 : index
    %c0_36 = arith.constant 0 : index
    %40 = vector.load %arg2[%c1, %c0_35, %c0_36] : memref<10x128x128xbf16, #tpu.memory_space<vmem>>, vector<1x128x128xbf16>
    %41 = vector.shape_cast %40 : vector<1x128x128xbf16> to vector<128x128xbf16>
    %cst_37 = arith.constant dense<0.000000e+00> : vector<64x128xf32>
    %42 = tpu.matmul %39, %41, %cst_37 {dimension_numbers = #tpu.dot_dimension_numbers<[1], [0], [0], [1], [0, 0, 1, 1], [], []>} : vector<64x128xbf16>, vector<128x128xbf16>, vector<64x128xf32> -> vector<64x128xf32>
    %c1_38 = arith.constant 1 : index
    %c0_39 = arith.constant 0 : index
    %c0_40 = arith.constant 0 : index
    %43 = vector.load %arg3[%c1_38, %c0_39, %c0_40] : memref<10x1x128xf32, #tpu.memory_space<vmem>>, vector<1x1x128xf32>
    %44 = vector.shape_cast %43 : vector<1x1x128xf32> to vector<1x128xf32>
    %45 = vector.broadcast %44 : vector<1x128xf32> to vector<64x128xf32>
    %46 = arith.addf %42, %45 : vector<64x128xf32>
    %47 = arith.negf %46 : vector<64x128xf32>
    %48 = math.exp %47 : vector<64x128xf32>
    %cst_41 = arith.constant 1.000000e+00 : f32
    %49 = vector.broadcast %cst_41 : f32 to vector<64x128xf32>
    %50 = arith.addf %49, %48 : vector<64x128xf32>
    %51 = arith.divf %49, %50 : vector<64x128xf32>
    %52 = arith.mulf %46, %51 : vector<64x128xf32>
    %53 = arith.truncf %52 : vector<64x128xf32> to vector<64x128xbf16>
    %c0_42 = arith.constant 0 : index
    %c0_43 = arith.constant 0 : index
    %c0_44 = arith.constant 0 : index
    %54 = vector.load %arg4[%c0_42, %c0_43, %c0_44] : memref<1x64x128xbf16, #tpu.memory_space<vmem>>, vector<1x64x128xbf16>
    %55 = vector.shape_cast %54 : vector<1x64x128xbf16> to vector<64x128xbf16>
    %56 = vector.shape_cast %53 : vector<64x128xbf16> to vector<1x64x128xbf16>
    tpu.vector_store %arg4[%c0_42, %c0_43, %c0_44], %56 {strides = array<i32>} : memref<1x64x128xbf16, #tpu.memory_space<vmem>>, vector<1x64x128xbf16>,
    %57 = arith.truncf %38 : vector<64x128xf32> to vector<64x128xbf16>
    %c2 = arith.constant 2 : index
    %c0_45 = arith.constant 0 : index
    %c0_46 = arith.constant 0 : index
    %58 = vector.load %arg2[%c2, %c0_45, %c0_46] : memref<10x128x128xbf16, #tpu.memory_space<vmem>>, vector<1x128x128xbf16>
    %59 = vector.shape_cast %58 : vector<1x128x128xbf16> to vector<128x128xbf16>
    %cst_47 = arith.constant dense<0.000000e+00> : vector<64x128xf32>
    %60 = tpu.matmul %57, %59, %cst_47 {dimension_numbers = #tpu.dot_dimension_numbers<[1], [0], [0], [1], [0, 0, 1, 1], [], []>} : vector<64x128xbf16>, vector<128x128xbf16>, vector<64x128xf32> -> vector<64x128xf32>
    %c2_48 = arith.constant 2 : index
    %c0_49 = arith.constant 0 : index
    %c0_50 = arith.constant 0 : index
    %61 = vector.load %arg3[%c2_48, %c0_49, %c0_50] : memref<10x1x128xf32, #tpu.memory_space<vmem>>, vector<1x1x128xf32>
    %62 = vector.shape_cast %61 : vector<1x1x128xf32> to vector<1x128xf32>
    %63 = vector.broadcast %62 : vector<1x128xf32> to vector<64x128xf32>
    %64 = arith.addf %60, %63 : vector<64x128xf32>
    %65 = arith.negf %64 : vector<64x128xf32>
    %66 = math.exp %65 : vector<64x128xf32>
    %cst_51 = arith.constant 1.000000e+00 : f32
    %67 = vector.broadcast %cst_51 : f32 to vector<64x128xf32>
    %68 = arith.addf %67, %66 : vector<64x128xf32>
    %69 = arith.divf %67, %68 : vector<64x128xf32>
    %70 = arith.mulf %64, %69 : vector<64x128xf32>
    %71 = arith.truncf %70 : vector<64x128xf32> to vector<64x128xbf16>
    %c3 = arith.constant 3 : index
    %c0_52 = arith.constant 0 : index
    %c0_53 = arith.constant 0 : index
    %72 = vector.load %arg2[%c3, %c0_52, %c0_53] : memref<10x128x128xbf16, #tpu.memory_space<vmem>>, vector<1x128x128xbf16>
    %73 = vector.shape_cast %72 : vector<1x128x128xbf16> to vector<128x128xbf16>
    %cst_54 = arith.constant dense<0.000000e+00> : vector<64x128xf32>
    %74 = tpu.matmul %71, %73, %cst_54 {dimension_numbers = #tpu.dot_dimension_numbers<[1], [0], [0], [1], [0, 0, 1, 1], [], []>} : vector<64x128xbf16>, vector<128x128xbf16>, vector<64x128xf32> -> vector<64x128xf32>
    %c3_55 = arith.constant 3 : index
    %c0_56 = arith.constant 0 : index
    %c0_57 = arith.constant 0 : index
    %75 = vector.load %arg3[%c3_55, %c0_56, %c0_57] : memref<10x1x128xf32, #tpu.memory_space<vmem>>, vector<1x1x128xf32>
    %76 = vector.shape_cast %75 : vector<1x1x128xf32> to vector<1x128xf32>
    %77 = vector.broadcast %76 : vector<1x128xf32> to vector<64x128xf32>
    %78 = arith.addf %74, %77 : vector<64x128xf32>
    %79 = arith.negf %78 : vector<64x128xf32>
    %80 = math.exp %79 : vector<64x128xf32>
    %cst_58 = arith.constant 1.000000e+00 : f32
    %81 = vector.broadcast %cst_58 : f32 to vector<64x128xf32>
    %82 = arith.addf %81, %80 : vector<64x128xf32>
    %83 = arith.divf %81, %82 : vector<64x128xf32>
    %84 = arith.mulf %78, %83 : vector<64x128xf32>
    %85 = arith.truncf %84 : vector<64x128xf32> to vector<64x128xbf16>
    %c0_59 = arith.constant 0 : index
    %c0_60 = arith.constant 0 : index
    %c0_61 = arith.constant 0 : index
    %86 = vector.load %arg5[%c0_59, %c0_60, %c0_61] : memref<1x64x128xbf16, #tpu.memory_space<vmem>>, vector<1x64x128xbf16>
    %87 = vector.shape_cast %86 : vector<1x64x128xbf16> to vector<64x128xbf16>
    %88 = vector.shape_cast %85 : vector<64x128xbf16> to vector<1x64x128xbf16>
    tpu.vector_store %arg5[%c0_59, %c0_60, %c0_61], %88 {strides = array<i32>} : memref<1x64x128xbf16, #tpu.memory_space<vmem>>, vector<1x64x128xbf16>,
    %c0_62 = arith.constant 0 : index
    %c0_63 = arith.constant 0 : index
    %89 = vector.load %arg9[%c0_62, %c0_63] : memref<64x128xf32, #tpu.memory_space<vmem>>, vector<64x128xf32>
    tpu.vector_store %arg9[%c0_62, %c0_63], %70 {strides = array<i32>} : memref<64x128xf32, #tpu.memory_space<vmem>>, vector<64x128xf32>,
    %c0_64 = arith.constant 0 : index
    %c0_65 = arith.constant 0 : index
    %90 = tpu.strided_load %arg9[%c0_64, %c0_65] {strides = array<i32: 2, 1>} : memref<64x128xf32, #tpu.memory_space<vmem>>, vector<4x128xf32>
    %c0_66 = arith.constant 0 : index
    %c0_67 = arith.constant 0 : index
    %91 = vector.load %arg10[%c0_66, %c0_67] : memref<64x128xf32, #tpu.memory_space<vmem>>, vector<4x128xf32>
    tpu.vector_store %arg10[%c0_66, %c0_67], %90 {strides = array<i32>} : memref<64x128xf32, #tpu.memory_space<vmem>>, vector<4x128xf32>,
    %c16_68 = arith.constant 16 : index
    %c0_69 = arith.constant 0 : index
    %92 = tpu.strided_load %arg9[%c16_68, %c0_69] {strides = array<i32: 2, 1>} : memref<64x128xf32, #tpu.memory_space<vmem>>, vector<4x128xf32>
    %c4 = arith.constant 4 : index
    %c0_70 = arith.constant 0 : index
    %93 = vector.load %arg10[%c4, %c0_70] : memref<64x128xf32, #tpu.memory_space<vmem>>, vector<4x128xf32>
    tpu.vector_store %arg10[%c4, %c0_70], %92 {strides = array<i32>} : memref<64x128xf32, #tpu.memory_space<vmem>>, vector<4x128xf32>,
    %c32_71 = arith.constant 32 : index
    %c0_72 = arith.constant 0 : index
    %94 = tpu.strided_load %arg9[%c32_71, %c0_72] {strides = array<i32: 2, 1>} : memref<64x128xf32, #tpu.memory_space<vmem>>, vector<4x128xf32>
    %c8_73 = arith.constant 8 : index
    %c0_74 = arith.constant 0 : index
    %95 = vector.load %arg10[%c8_73, %c0_74] : memref<64x128xf32, #tpu.memory_space<vmem>>, vector<4x128xf32>
    tpu.vector_store %arg10[%c8_73, %c0_74], %94 {strides = array<i32>} : memref<64x128xf32, #tpu.memory_space<vmem>>, vector<4x128xf32>,
    %c48_75 = arith.constant 48 : index
    %c0_76 = arith.constant 0 : index
    %96 = tpu.strided_load %arg9[%c48_75, %c0_76] {strides = array<i32: 2, 1>} : memref<64x128xf32, #tpu.memory_space<vmem>>, vector<4x128xf32>
    %c12 = arith.constant 12 : index
    %c0_77 = arith.constant 0 : index
    %97 = vector.load %arg10[%c12, %c0_77] : memref<64x128xf32, #tpu.memory_space<vmem>>, vector<4x128xf32>
    tpu.vector_store %arg10[%c12, %c0_77], %96 {strides = array<i32>} : memref<64x128xf32, #tpu.memory_space<vmem>>, vector<4x128xf32>,
    %c0_78 = arith.constant 0 : index
    %c0_79 = arith.constant 0 : index
    %98 = vector.load %arg10[%c0_78, %c0_79] : memref<64x128xf32, #tpu.memory_space<vmem>>, vector<16x128xf32>
    %99 = arith.truncf %98 : vector<16x128xf32> to vector<16x128xbf16>
    %c4_80 = arith.constant 4 : index
    %c0_81 = arith.constant 0 : index
    %c0_82 = arith.constant 0 : index
    %100 = vector.load %arg2[%c4_80, %c0_81, %c0_82] : memref<10x128x128xbf16, #tpu.memory_space<vmem>>, vector<1x128x128xbf16>
    %101 = vector.shape_cast %100 : vector<1x128x128xbf16> to vector<128x128xbf16>
    %cst_83 = arith.constant dense<0.000000e+00> : vector<16x128xf32>
    %102 = tpu.matmul %99, %101, %cst_83 {dimension_numbers = #tpu.dot_dimension_numbers<[1], [0], [0], [1], [0, 0, 1, 1], [], []>} : vector<16x128xbf16>, vector<128x128xbf16>, vector<16x128xf32> -> vector<16x128xf32>
    %c4_84 = arith.constant 4 : index
    %c0_85 = arith.constant 0 : index
    %c0_86 = arith.constant 0 : index
    %103 = vector.load %arg3[%c4_84, %c0_85, %c0_86] : memref<10x1x128xf32, #tpu.memory_space<vmem>>, vector<1x1x128xf32>
    %104 = vector.shape_cast %103 : vector<1x1x128xf32> to vector<1x128xf32>
    %105 = vector.broadcast %104 : vector<1x128xf32> to vector<16x128xf32>
    %106 = arith.addf %102, %105 : vector<16x128xf32>
    %107 = arith.negf %106 : vector<16x128xf32>
    %108 = math.exp %107 : vector<16x128xf32>
    %cst_87 = arith.constant 1.000000e+00 : f32
    %109 = vector.broadcast %cst_87 : f32 to vector<16x128xf32>
    %110 = arith.addf %109, %108 : vector<16x128xf32>
    %111 = arith.divf %109, %110 : vector<16x128xf32>
    %112 = arith.mulf %106, %111 : vector<16x128xf32>
    %113 = arith.truncf %112 : vector<16x128xf32> to vector<16x128xbf16>
    %c5 = arith.constant 5 : index
    %c0_88 = arith.constant 0 : index
    %c0_89 = arith.constant 0 : index
    %114 = vector.load %arg2[%c5, %c0_88, %c0_89] : memref<10x128x128xbf16, #tpu.memory_space<vmem>>, vector<1x128x128xbf16>
    %115 = vector.shape_cast %114 : vector<1x128x128xbf16> to vector<128x128xbf16>
    %cst_90 = arith.constant dense<0.000000e+00> : vector<16x128xf32>
    %116 = tpu.matmul %113, %115, %cst_90 {dimension_numbers = #tpu.dot_dimension_numbers<[1], [0], [0], [1], [0, 0, 1, 1], [], []>} : vector<16x128xbf16>, vector<128x128xbf16>, vector<16x128xf32> -> vector<16x128xf32>
    %c5_91 = arith.constant 5 : index
    %c0_92 = arith.constant 0 : index
    %c0_93 = arith.constant 0 : index
    %117 = vector.load %arg3[%c5_91, %c0_92, %c0_93] : memref<10x1x128xf32, #tpu.memory_space<vmem>>, vector<1x1x128xf32>
    %118 = vector.shape_cast %117 : vector<1x1x128xf32> to vector<1x128xf32>
    %119 = vector.broadcast %118 : vector<1x128xf32> to vector<16x128xf32>
    %120 = arith.addf %116, %119 : vector<16x128xf32>
    %121 = arith.negf %120 : vector<16x128xf32>
    %122 = math.exp %121 : vector<16x128xf32>
    %cst_94 = arith.constant 1.000000e+00 : f32
    %123 = vector.broadcast %cst_94 : f32 to vector<16x128xf32>
    %124 = arith.addf %123, %122 : vector<16x128xf32>
    %125 = arith.divf %123, %124 : vector<16x128xf32>
    %126 = arith.mulf %120, %125 : vector<16x128xf32>
    %127 = arith.truncf %126 : vector<16x128xf32> to vector<16x128xbf16>
    %c0_95 = arith.constant 0 : index
    %c0_96 = arith.constant 0 : index
    %c0_97 = arith.constant 0 : index
    %128 = vector.load %arg6[%c0_95, %c0_96, %c0_97] : memref<1x16x128xbf16, #tpu.memory_space<vmem>>, vector<1x16x128xbf16>
    %129 = vector.shape_cast %128 : vector<1x16x128xbf16> to vector<16x128xbf16>
    %130 = vector.shape_cast %127 : vector<16x128xbf16> to vector<1x16x128xbf16>
    tpu.vector_store %arg6[%c0_95, %c0_96, %c0_97], %130 {strides = array<i32>} : memref<1x16x128xbf16, #tpu.memory_space<vmem>>, vector<1x16x128xbf16>,
    %131 = arith.truncf %112 : vector<16x128xf32> to vector<16x128xbf16>
    %c6 = arith.constant 6 : index
    %c0_98 = arith.constant 0 : index
    %c0_99 = arith.constant 0 : index
    %132 = vector.load %arg2[%c6, %c0_98, %c0_99] : memref<10x128x128xbf16, #tpu.memory_space<vmem>>, vector<1x128x128xbf16>
    %133 = vector.shape_cast %132 : vector<1x128x128xbf16> to vector<128x128xbf16>
    %cst_100 = arith.constant dense<0.000000e+00> : vector<16x128xf32>
    %134 = tpu.matmul %131, %133, %cst_100 {dimension_numbers = #tpu.dot_dimension_numbers<[1], [0], [0], [1], [0, 0, 1, 1], [], []>} : vector<16x128xbf16>, vector<128x128xbf16>, vector<16x128xf32> -> vector<16x128xf32>
    %c6_101 = arith.constant 6 : index
    %c0_102 = arith.constant 0 : index
    %c0_103 = arith.constant 0 : index
    %135 = vector.load %arg3[%c6_101, %c0_102, %c0_103] : memref<10x1x128xf32, #tpu.memory_space<vmem>>, vector<1x1x128xf32>
    %136 = vector.shape_cast %135 : vector<1x1x128xf32> to vector<1x128xf32>
    %137 = vector.broadcast %136 : vector<1x128xf32> to vector<16x128xf32>
    %138 = arith.addf %134, %137 : vector<16x128xf32>
    %139 = arith.negf %138 : vector<16x128xf32>
    %140 = math.exp %139 : vector<16x128xf32>
    %cst_104 = arith.constant 1.000000e+00 : f32
    %141 = vector.broadcast %cst_104 : f32 to vector<16x128xf32>
    %142 = arith.addf %141, %140 : vector<16x128xf32>
    %143 = arith.divf %141, %142 : vector<16x128xf32>
    %144 = arith.mulf %138, %143 : vector<16x128xf32>
    %145 = arith.truncf %144 : vector<16x128xf32> to vector<16x128xbf16>
    %c7 = arith.constant 7 : index
    %c0_105 = arith.constant 0 : index
    %c0_106 = arith.constant 0 : index
    %146 = vector.load %arg2[%c7, %c0_105, %c0_106] : memref<10x128x128xbf16, #tpu.memory_space<vmem>>, vector<1x128x128xbf16>
    %147 = vector.shape_cast %146 : vector<1x128x128xbf16> to vector<128x128xbf16>
    %cst_107 = arith.constant dense<0.000000e+00> : vector<16x128xf32>
    %148 = tpu.matmul %145, %147, %cst_107 {dimension_numbers = #tpu.dot_dimension_numbers<[1], [0], [0], [1], [0, 0, 1, 1], [], []>} : vector<16x128xbf16>, vector<128x128xbf16>, vector<16x128xf32> -> vector<16x128xf32>
    %c7_108 = arith.constant 7 : index
    %c0_109 = arith.constant 0 : index
    %c0_110 = arith.constant 0 : index
    %149 = vector.load %arg3[%c7_108, %c0_109, %c0_110] : memref<10x1x128xf32, #tpu.memory_space<vmem>>, vector<1x1x128xf32>
    %150 = vector.shape_cast %149 : vector<1x1x128xf32> to vector<1x128xf32>
    %151 = vector.broadcast %150 : vector<1x128xf32> to vector<16x128xf32>
    %152 = arith.addf %148, %151 : vector<16x128xf32>
    %153 = arith.negf %152 : vector<16x128xf32>
    %154 = math.exp %153 : vector<16x128xf32>
    %cst_111 = arith.constant 1.000000e+00 : f32
    %155 = vector.broadcast %cst_111 : f32 to vector<16x128xf32>
    %156 = arith.addf %155, %154 : vector<16x128xf32>
    %157 = arith.divf %155, %156 : vector<16x128xf32>
    %158 = arith.mulf %152, %157 : vector<16x128xf32>
    %159 = arith.truncf %158 : vector<16x128xf32> to vector<16x128xbf16>
    %c0_112 = arith.constant 0 : index
    %c0_113 = arith.constant 0 : index
    %c0_114 = arith.constant 0 : index
    %160 = vector.load %arg7[%c0_112, %c0_113, %c0_114] : memref<1x16x128xbf16, #tpu.memory_space<vmem>>, vector<1x16x128xbf16>
    %161 = vector.shape_cast %160 : vector<1x16x128xbf16> to vector<16x128xbf16>
    %162 = vector.shape_cast %159 : vector<16x128xbf16> to vector<1x16x128xbf16>
    tpu.vector_store %arg7[%c0_112, %c0_113, %c0_114], %162 {strides = array<i32>} : memref<1x16x128xbf16, #tpu.memory_space<vmem>>, vector<1x16x128xbf16>,
    %c0_115 = arith.constant 0 : index
    %c0_116 = arith.constant 0 : index
    %163 = vector.load %arg9[%c0_115, %c0_116] : memref<64x128xf32, #tpu.memory_space<vmem>>, vector<16x128xf32>
    tpu.vector_store %arg9[%c0_115, %c0_116], %144 {strides = array<i32>} : memref<64x128xf32, #tpu.memory_space<vmem>>, vector<16x128xf32>,
    %c0_117 = arith.constant 0 : index
    %c0_118 = arith.constant 0 : index
    %164 = tpu.strided_load %arg9[%c0_117, %c0_118] {strides = array<i32: 2, 1>} : memref<64x128xf32, #tpu.memory_space<vmem>>, vector<2x128xf32>
    %c0_119 = arith.constant 0 : index
    %c0_120 = arith.constant 0 : index
    %165 = vector.load %arg10[%c0_119, %c0_120] : memref<64x128xf32, #tpu.memory_space<vmem>>, vector<2x128xf32>
    tpu.vector_store %arg10[%c0_119, %c0_120], %164 {strides = array<i32>} : memref<64x128xf32, #tpu.memory_space<vmem>>, vector<2x128xf32>,
    %c8_121 = arith.constant 8 : index
    %c0_122 = arith.constant 0 : index
    %166 = tpu.strided_load %arg9[%c8_121, %c0_122] {strides = array<i32: 2, 1>} : memref<64x128xf32, #tpu.memory_space<vmem>>, vector<2x128xf32>
    %c2_123 = arith.constant 2 : index
    %c0_124 = arith.constant 0 : index
    %167 = vector.load %arg10[%c2_123, %c0_124] : memref<64x128xf32, #tpu.memory_space<vmem>>, vector<2x128xf32>
    tpu.vector_store %arg10[%c2_123, %c0_124], %166 {strides = array<i32>} : memref<64x128xf32, #tpu.memory_space<vmem>>, vector<2x128xf32>,
    %c0_125 = arith.constant 0 : index
    %c0_126 = arith.constant 0 : index
    %168 = vector.load %arg10[%c0_125, %c0_126] : memref<64x128xf32, #tpu.memory_space<vmem>>, vector<4x128xf32>
    %169 = arith.truncf %168 : vector<4x128xf32> to vector<4x128xbf16>
    %c8_127 = arith.constant 8 : index
    %c0_128 = arith.constant 0 : index
    %c0_129 = arith.constant 0 : index
    %170 = vector.load %arg2[%c8_127, %c0_128, %c0_129] : memref<10x128x128xbf16, #tpu.memory_space<vmem>>, vector<1x128x128xbf16>
    %171 = vector.shape_cast %170 : vector<1x128x128xbf16> to vector<128x128xbf16>
    %cst_130 = arith.constant dense<0.000000e+00> : vector<4x128xf32>
    %172 = tpu.matmul %169, %171, %cst_130 {dimension_numbers = #tpu.dot_dimension_numbers<[1], [0], [0], [1], [0, 0, 1, 1], [], []>} : vector<4x128xbf16>, vector<128x128xbf16>, vector<4x128xf32> -> vector<4x128xf32>
    %c8_131 = arith.constant 8 : index
    %c0_132 = arith.constant 0 : index
    %c0_133 = arith.constant 0 : index
    %173 = vector.load %arg3[%c8_131, %c0_132, %c0_133] : memref<10x1x128xf32, #tpu.memory_space<vmem>>, vector<1x1x128xf32>
    %174 = vector.shape_cast %173 : vector<1x1x128xf32> to vector<1x128xf32>
    %175 = vector.broadcast %174 : vector<1x128xf32> to vector<4x128xf32>
    %176 = arith.addf %172, %175 : vector<4x128xf32>
    %177 = arith.negf %176 : vector<4x128xf32>
    %178 = math.exp %177 : vector<4x128xf32>
    %cst_134 = arith.constant 1.000000e+00 : f32
    %179 = vector.broadcast %cst_134 : f32 to vector<4x128xf32>
    %180 = arith.addf %179, %178 : vector<4x128xf32>
    %181 = arith.divf %179, %180 : vector<4x128xf32>
    %182 = arith.mulf %176, %181 : vector<4x128xf32>
    %183 = arith.truncf %182 : vector<4x128xf32> to vector<4x128xbf16>
    %c9 = arith.constant 9 : index
    %c0_135 = arith.constant 0 : index
    %c0_136 = arith.constant 0 : index
    %184 = vector.load %arg2[%c9, %c0_135, %c0_136] : memref<10x128x128xbf16, #tpu.memory_space<vmem>>, vector<1x128x128xbf16>
    %185 = vector.shape_cast %184 : vector<1x128x128xbf16> to vector<128x128xbf16>
    %cst_137 = arith.constant dense<0.000000e+00> : vector<4x128xf32>
    %186 = tpu.matmul %183, %185, %cst_137 {dimension_numbers = #tpu.dot_dimension_numbers<[1], [0], [0], [1], [0, 0, 1, 1], [], []>} : vector<4x128xbf16>, vector<128x128xbf16>, vector<4x128xf32> -> vector<4x128xf32>
    %c9_138 = arith.constant 9 : index
    %c0_139 = arith.constant 0 : index
    %c0_140 = arith.constant 0 : index
    %187 = vector.load %arg3[%c9_138, %c0_139, %c0_140] : memref<10x1x128xf32, #tpu.memory_space<vmem>>, vector<1x1x128xf32>
    %188 = vector.shape_cast %187 : vector<1x1x128xf32> to vector<1x128xf32>
    %189 = vector.broadcast %188 : vector<1x128xf32> to vector<4x128xf32>
    %190 = arith.addf %186, %189 : vector<4x128xf32>
    %191 = arith.negf %190 : vector<4x128xf32>
    %192 = math.exp %191 : vector<4x128xf32>
    %cst_141 = arith.constant 1.000000e+00 : f32
    %193 = vector.broadcast %cst_141 : f32 to vector<4x128xf32>
    %194 = arith.addf %193, %192 : vector<4x128xf32>
    %195 = arith.divf %193, %194 : vector<4x128xf32>
    %196 = arith.mulf %190, %195 : vector<4x128xf32>
    %197 = arith.truncf %196 : vector<4x128xf32> to vector<4x128xbf16>
    %c0_142 = arith.constant 0 : index
    %c0_143 = arith.constant 0 : index
    %c0_144 = arith.constant 0 : index
    %198 = vector.load %arg8[%c0_142, %c0_143, %c0_144] : memref<1x4x128xbf16, #tpu.memory_space<vmem>>, vector<1x4x128xbf16>
    %199 = vector.shape_cast %198 : vector<1x4x128xbf16> to vector<4x128xbf16>
    %200 = vector.shape_cast %197 : vector<4x128xbf16> to vector<1x4x128xbf16>
    tpu.vector_store %arg8[%c0_142, %c0_143, %c0_144], %200 {strides = array<i32>} : memref<1x4x128xbf16, #tpu.memory_space<vmem>>, vector<1x4x128xbf16>,
    return
  }
  func.func @transform_0(%arg0: i32) -> (i32, i32, i32) {
    %c0_i32 = arith.constant 0 : i32
    %c0_i32_0 = arith.constant 0 : i32
    %c0_i32_1 = arith.constant 0 : i32
    return %arg0, %c0_i32, %c0_i32_0 : i32, i32, i32
  }
  func.func @transform_1(%arg0: i32) -> (i32, i32, i32) {
    %c0_i32 = arith.constant 0 : i32
    %c0_i32_0 = arith.constant 0 : i32
    %c0_i32_1 = arith.constant 0 : i32
    %c0_i32_2 = arith.constant 0 : i32
    return %c0_i32, %c0_i32_0, %c0_i32_1 : i32, i32, i32
  }
  func.func @transform_2(%arg0: i32) -> (i32, i32, i32) {
    %c0_i32 = arith.constant 0 : i32
    %c0_i32_0 = arith.constant 0 : i32
    %c0_i32_1 = arith.constant 0 : i32
    %c0_i32_2 = arith.constant 0 : i32
    return %c0_i32, %c0_i32_0, %c0_i32_1 : i32, i32, i32
  }
  func.func @transform_3(%arg0: i32) -> (i32, i32, i32) {
    %c0_i32 = arith.constant 0 : i32
    %c0_i32_0 = arith.constant 0 : i32
    %c0_i32_1 = arith.constant 0 : i32
    return %arg0, %c0_i32, %c0_i32_0 : i32, i32, i32
  }
  func.func @transform_4(%arg0: i32) -> (i32, i32, i32) {
    %c0_i32 = arith.constant 0 : i32
    %c0_i32_0 = arith.constant 0 : i32
    %c0_i32_1 = arith.constant 0 : i32
    return %arg0, %c0_i32, %c0_i32_0 : i32, i32, i32
  }
  func.func @transform_5(%arg0: i32) -> (i32, i32, i32) {
    %c0_i32 = arith.constant 0 : i32
    %c0_i32_0 = arith.constant 0 : i32
    %c0_i32_1 = arith.constant 0 : i32
    return %arg0, %c0_i32, %c0_i32_0 : i32, i32, i32
  }
  func.func @transform_6(%arg0: i32) -> (i32, i32, i32) {
    %c0_i32 = arith.constant 0 : i32
    %c0_i32_0 = arith.constant 0 : i32
    %c0_i32_1 = arith.constant 0 : i32
    return %arg0, %c0_i32, %c0_i32_0 : i32, i32, i32
  }
  func.func @transform_7(%arg0: i32) -> (i32, i32, i32) {
    %c0_i32 = arith.constant 0 : i32
    %c0_i32_0 = arith.constant 0 : i32
    %c0_i32_1 = arith.constant 0 : i32
    return %arg0, %c0_i32, %c0_i32_0 : i32, i32, i32
  }
}

</mosaic_0001>

<llo_original>
// kernel: _backbone_forward.1
$region0: #{_backbone_forward.1}
  #allocation0 [shape = 'u32[]', space=smem, size = 0x4, offset = 0x4, fixed_abs, tag = 'smem constant byte address 0x4 - core index']
  #allocation1 [shape = 'u32[72,128]{1,0:T(1,128)}', space=vmem, size = 0x9000, scoped, tag = 'internal scratch']
  #allocation2 [shape = 'f32[64,128]{1,0:T(8,128)}', space=vmem, size = 0x8000, scoped, tag = 'scratch operand']
  #allocation3 [shape = 'f32[64,128]{1,0:T(8,128)}', space=vmem, size = 0x8000, scoped, tag = 'scratch operand']
  %s0 = inlined_call_operand.vmem [shape: f32[2,256,128], index: 0, kind: input, shape index: {}]
  %s1 = inlined_call_operand.vmem [shape: bf16[10,128,128], index: 1, kind: input, shape index: {}]
  %s2 = inlined_call_operand.vmem [shape: f32[10,1,128], index: 2, kind: input, shape index: {}]
  %s3 = inlined_call_operand.vmem [shape: bf16[2,64,128], index: 3, kind: output, shape index: {0}]
  %s4 = inlined_call_operand.vmem [shape: bf16[2,64,128], index: 4, kind: output, shape index: {1}]
  %s5 = inlined_call_operand.vmem [shape: bf16[2,16,128], index: 5, kind: output, shape index: {2}]
  %s6 = inlined_call_operand.vmem [shape: bf16[2,16,128], index: 6, kind: output, shape index: {3}]
  %s7 = inlined_call_operand.vmem [shape: bf16[2,4,128], index: 7, kind: output, shape index: {4}]
  %8 = xla_tuple %s3, %s4, %s5, %s6, %s7
  %s9 = sld [smem:[#allocation0]]
  $region77: #{_backbone_forward.1} parent=0
    _
  %s11 = ssub.s32 1, %s9
  %s12 = scalar_select 0, %s11, %s9
  loop: start=0, step=1, limit=4
  $region2: #{_backbone_forward.1} parent=0 // loop_pre_header
    _
  $region3: #{_backbone_forward.1} parent=0 // loop_header
    %s14 = sphi 0, %s18
    %p15 = scmp.ge.s32.totalorder %s14, 4
    %s24 = sphi 0, %s26
    %s27 = sphi 0, %s24
    %s28 = sphi 0, %s27
    %s44 = sphi 0, %s28
    %s48 = sphi 0, %s48
    %s50 = sphi 0, %s48
    %s51 = sphi 0, %s50
    %s65 = sphi 0, %s51
    %s69 = sphi 0, %s69
    %s71 = sphi 0, %s69
    %s72 = sphi 0, %s71
    %s86 = sphi 0, %s72
    %s92 = sphi 0, %s94
    %s95 = sphi 0, %s92
    %s96 = sphi 0, %s95
    %s112 = sphi 0, %s96
    %s118 = sphi 0, %s120
    %s121 = sphi 0, %s118
    %s122 = sphi 0, %s121
    %s138 = sphi 0, %s122
    %s144 = sphi 0, %s146
    %s147 = sphi 0, %s144
    %s148 = sphi 0, %s147
    %s164 = sphi 0, %s148
    %s170 = sphi 0, %s172
    %s173 = sphi 0, %s170
    %s174 = sphi 0, %s173
    %s190 = sphi 0, %s174
    %s196 = sphi 0, %s198
    %s199 = sphi 0, %s196
    %s200 = sphi 0, %s199
    %s216 = sphi 0, %s200
  $region4: #{_backbone_forward.1} parent=0 // loop_header_branch
    %17 = sbr.rel (%p15) target = $region8
  $region5: #{_backbone_forward.1} parent=0 // loop_body
    %s19 = ssub.s32 %s14, 1
    %s20 = ssub.s32 %s14, 2
    %s21 = sadd.s32 %s14, 1
    %s22 = ssub.s32 %s14, %s21
    %p23 = scmp.eq.s32.totalorder %s22, 0
    %s25 = sadd.s32 %s24, 1
    %s26 = scalar_select %p23, %s24, %s25
    %p29 = pneg %p23
    %p30 = scmp.eq.s32.totalorder %s14, 1
    %p31 = por %p29, %p30
    %p32 = scmp.ne.s32.totalorder %s24, %s27
    %p33 = scmp.eq.s32.totalorder %s14, 0
    %p34 = por %p32, %p33
    %p35 = scmp.ne.s32.totalorder %s24, %s27
    %p36 = scmp.eq.s32.totalorder %s19, 1
    %p37 = por %p35, %p36
    %p38 = scmp.ne.s32.totalorder %s27, %s28
    %p39 = scmp.eq.s32.totalorder %s19, 0
    %p40 = por %p38, %p39
    %p41 = scmp.ne.s32.totalorder %s27, %s28
    %p42 = scmp.eq.s32.totalorder %s20, 1
    %p43 = por %p41, %p42
    %p45 = scmp.ne.s32.totalorder %s28, %s44
    %p46 = scmp.eq.s32.totalorder %s20, 0
    %p47 = por %p45, %p46
    %s49 = sadd.s32 %s48, 1
    %p52 = scmp.eq.s32.totalorder %s14, 1
    %p53 = scmp.ne.s32.totalorder %s48, %s50
    %p54 = scmp.eq.s32.totalorder %s14, 0
    %p55 = por %p53, %p54
    %p56 = scmp.ne.s32.totalorder %s48, %s50
    %p57 = scmp.eq.s32.totalorder %s19, 1
    %p58 = por %p56, %p57
    %p59 = scmp.ne.s32.totalorder %s50, %s51
    %p60 = scmp.eq.s32.totalorder %s19, 0
    %p61 = por %p59, %p60
    %p62 = scmp.ne.s32.totalorder %s50, %s51
    %p63 = scmp.eq.s32.totalorder %s20, 1
    %p64 = por %p62, %p63
    %p66 = scmp.ne.s32.totalorder %s51, %s65
    %p67 = scmp.eq.s32.totalorder %s20, 0
    %p68 = por %p66, %p67
    %s70 = sadd.s32 %s69, 1
    %p73 = scmp.eq.s32.totalorder %s14, 1
    %p74 = scmp.ne.s32.totalorder %s69, %s71
    %p75 = scmp.eq.s32.totalorder %s14, 0
    %p76 = por %p74, %p75
    %p77 = scmp.ne.s32.totalorder %s69, %s71
    %p78 = scmp.eq.s32.totalorder %s19, 1
    %p79 = por %p77, %p78
    %p80 = scmp.ne.s32.totalorder %s71, %s72
    %p81 = scmp.eq.s32.totalorder %s19, 0
    %p82 = por %p80, %p81
    %p83 = scmp.ne.s32.totalorder %s71, %s72
    %p84 = scmp.eq.s32.totalorder %s20, 1
    %p85 = por %p83, %p84
    %p87 = scmp.ne.s32.totalorder %s72, %s86
    %p88 = scmp.eq.s32.totalorder %s20, 0
    %p89 = por %p87, %p88
    %s90 = ssub.s32 %s14, %s21
    %p91 = scmp.eq.s32.totalorder %s90, 0
    %s93 = sadd.s32 %s92, 1
    %s94 = scalar_select %p91, %s92, %s93
    %p97 = pneg %p91
    %p98 = scmp.eq.s32.totalorder %s14, 1
    %p99 = por %p97, %p98
    %p100 = scmp.ne.s32.totalorder %s92, %s95
    %p101 = scmp.eq.s32.totalorder %s14, 0
    %p102 = por %p100, %p101
    %p103 = scmp.ne.s32.totalorder %s92, %s95
    %p104 = scmp.eq.s32.totalorder %s19, 1
    %p105 = por %p103, %p104
    %p106 = scmp.ne.s32.totalorder %s95, %s96
    %p107 = scmp.eq.s32.totalorder %s19, 0
    %p108 = por %p106, %p107
    %p109 = scmp.ne.s32.totalorder %s95, %s96
    %p110 = scmp.eq.s32.totalorder %s20, 1
    %p111 = por %p109, %p110
    %p113 = scmp.ne.s32.totalorder %s96, %s112
    %p114 = scmp.eq.s32.totalorder %s20, 0
    %p115 = por %p113, %p114
    %s116 = ssub.s32 %s14, %s21
    %p117 = scmp.eq.s32.totalorder %s116, 0
    %s119 = sadd.s32 %s118, 1
    %s120 = scalar_select %p117, %s118, %s119
    %p123 = pneg %p117
    %p124 = scmp.eq.s32.totalorder %s14, 1
    %p125 = por %p123, %p124
    %p126 = scmp.ne.s32.totalorder %s118, %s121
    %p127 = scmp.eq.s32.totalorder %s14, 0
    %p128 = por %p126, %p127
    %p129 = scmp.ne.s32.totalorder %s118, %s121
    %p130 = scmp.eq.s32.totalorder %s19, 1
    %p131 = por %p129, %p130
    %p132 = scmp.ne.s32.totalorder %s121, %s122
    %p133 = scmp.eq.s32.totalorder %s19, 0
    %p134 = por %p132, %p133
    %p135 = scmp.ne.s32.totalorder %s121, %s122
    %p136 = scmp.eq.s32.totalorder %s20, 1
    %p137 = por %p135, %p136
    %p139 = scmp.ne.s32.totalorder %s122, %s138
    %p140 = scmp.eq.s32.totalorder %s20, 0
    %p141 = por %p139, %p140
    %s142 = ssub.s32 %s14, %s21
    %p143 = scmp.eq.s32.totalorder %s142, 0
    %s145 = sadd.s32 %s144, 1
    %s146 = scalar_select %p143, %s144, %s145
    %p149 = pneg %p143
    %p150 = scmp.eq.s32.totalorder %s14, 1
    %p151 = por %p149, %p150
    %p152 = scmp.ne.s32.totalorder %s144, %s147
    %p153 = scmp.eq.s32.totalorder %s14, 0
    %p154 = por %p152, %p153
    %p155 = scmp.ne.s32.totalorder %s144, %s147
    %p156 = scmp.eq.s32.totalorder %s19, 1
    %p157 = por %p155, %p156
    %p158 = scmp.ne.s32.totalorder %s147, %s148
    %p159 = scmp.eq.s32.totalorder %s19, 0
    %p160 = por %p158, %p159
    %p161 = scmp.ne.s32.totalorder %s147, %s148
    %p162 = scmp.eq.s32.totalorder %s20, 1
    %p163 = por %p161, %p162
    %p165 = scmp.ne.s32.totalorder %s148, %s164
    %p166 = scmp.eq.s32.totalorder %s20, 0
    %p167 = por %p165, %p166
    %s168 = ssub.s32 %s14, %s21
    %p169 = scmp.eq.s32.totalorder %s168, 0
    %s171 = sadd.s32 %s170, 1
    %s172 = scalar_select %p169, %s170, %s171
    %p175 = pneg %p169
    %p176 = scmp.eq.s32.totalorder %s14, 1
    %p177 = por %p175, %p176
    %p178 = scmp.ne.s32.totalorder %s170, %s173
    %p179 = scmp.eq.s32.totalorder %s14, 0
    %p180 = por %p178, %p179
    %p181 = scmp.ne.s32.totalorder %s170, %s173
    %p182 = scmp.eq.s32.totalorder %s19, 1
    %p183 = por %p181, %p182
    %p184 = scmp.ne.s32.totalorder %s173, %s174
    %p185 = scmp.eq.s32.totalorder %s19, 0
    %p186 = por %p184, %p185
    %p187 = scmp.ne.s32.totalorder %s173, %s174
    %p188 = scmp.eq.s32.totalorder %s20, 1
    %p189 = por %p187, %p188
    %p191 = scmp.ne.s32.totalorder %s174, %s190
    %p192 = scmp.eq.s32.totalorder %s20, 0
    %p193 = por %p191, %p192
    %s194 = ssub.s32 %s14, %s21
    %p195 = scmp.eq.s32.totalorder %s194, 0
    %s197 = sadd.s32 %s196, 1
    %s198 = scalar_select %p195, %s196, %s197
    %p201 = pneg %p195
    %p202 = scmp.eq.s32.totalorder %s14, 1
    %p203 = por %p201, %p202
    %p204 = scmp.ne.s32.totalorder %s196, %s199
    %p205 = scmp.eq.s32.totalorder %s14, 0
    %p206 = por %p204, %p205
    %p207 = scmp.ne.s32.totalorder %s196, %s199
    %p208 = scmp.eq.s32.totalorder %s19, 1
    %p209 = por %p207, %p208
    %p210 = scmp.ne.s32.totalorder %s199, %s200
    %p211 = scmp.eq.s32.totalorder %s19, 0
    %p212 = por %p210, %p211
    %p213 = scmp.ne.s32.totalorder %s199, %s200
    %p214 = scmp.eq.s32.totalorder %s20, 1
    %p215 = por %p213, %p214
    %p217 = scmp.ne.s32.totalorder %s200, %s216
    %p218 = scmp.eq.s32.totalorder %s20, 0
    %p219 = por %p217, %p218
    %p220 = scmp.le.s32.totalorder 1, %s14
    %p221 = scmp.lt.s32.totalorder %s14, 3
    %p222 = pnand %p220, %p221
    %p223 = pneg %p222
    // Predicated region
    $region9: #{_backbone_forward.1} parent=5 // pred_check
      _
    $region10: #{_backbone_forward.1} parent=5 // pred_check_branch
      %225 = sbr.rel (%p222) target = $region12
    $region11: #{_backbone_forward.1} parent=5 // pred_region
      %s226 = ssub.s32 %s14, 1
      // Predicated region
      $region13: #{_backbone_forward.1} parent=11 // pred_check
        %p227 = pneg %p61
      $region14: #{_backbone_forward.1} parent=11 // pred_check_branch
        %229 = sbr.rel (%p227) target = $region16
      $region15: #{_backbone_forward.1} parent=11 // pred_region
        _
      $region16: #{_backbone_forward.1} parent=11 // pred_fallthru
        _
      // Predicated region
      $region17: #{_backbone_forward.1} parent=11 // pred_check
        %p230 = pneg %p82
      $region18: #{_backbone_forward.1} parent=11 // pred_check_branch
        %232 = sbr.rel (%p230) target = $region20
      $region19: #{_backbone_forward.1} parent=11 // pred_region
        _
      $region20: #{_backbone_forward.1} parent=11 // pred_fallthru
        _
    $region12: #{_backbone_forward.1} parent=5 // pred_fallthru
      _
    %p233 = scmp.lt.s32.totalorder %s14, 2
    // Predicated region
    $region21: #{_backbone_forward.1} parent=5 // pred_check
      %p234 = pneg %p233
    $region22: #{_backbone_forward.1} parent=5 // pred_check_branch
      %236 = sbr.rel (%p234) target = $region24
    $region23: #{_backbone_forward.1} parent=5 // pred_region
      // Predicated region
      $region25: #{_backbone_forward.1} parent=23 // pred_check
        %p237 = pneg %p34
      $region26: #{_backbone_forward.1} parent=23 // pred_check_branch
        %239 = sbr.rel (%p237) target = $region28
      $region27: #{_backbone_forward.1} parent=23 // pred_region
        %p240 = scmp.lt.s32.totalorder %s14, 1
        %s241 = scalar_select %p240, %s14, 1
        %s242 = smul.addr %s241, 32
        %s243 = smul.addr %s242, 8
        %s244 = scalar_lea.vmem %s0, %s243
      $region28: #{_backbone_forward.1} parent=23 // pred_fallthru
        _
    $region24: #{_backbone_forward.1} parent=5 // pred_fallthru
      _
    %p245 = scmp.le.s32.totalorder 1, %s14
    %p246 = scmp.lt.s32.totalorder %s14, 3
    %p247 = pnand %p245, %p246
    %p248 = pneg %p247
    // Predicated region
    $region29: #{_backbone_forward.1} parent=5 // pred_check
      _
    $region30: #{_backbone_forward.1} parent=5 // pred_check_branch
      %250 = sbr.rel (%p247) target = $region32
    $region31: #{_backbone_forward.1} parent=5 // pred_region
      %s251 = ssub.s32 %s14, 1
      %p252 = scmp.lt.s32.totalorder %s19, 1
      %s253 = scalar_select %p252, %s19, 1
      %s254 = smul.addr %s253, 32
      %s255 = smul.addr %s254, 8
      %s256 = scalar_lea.vmem %s0, %s255
      %p257 = pneg %p40
      %p258 = pneg %p37
      %p259 = pneg %p61
      %p260 = pneg %p58
      %p261 = pneg %p82
      %p262 = pneg %p79
      %p263 = pneg %p108
      %p264 = pneg %p105
      %p265 = scmp.lt.s32.totalorder %s19, 1
      %s266 = scalar_select %p265, %s19, 1
      %s267 = smul.addr %s266, 8
      %s268 = smul.addr %s267, 4
      %s269 = scalar_lea.vmem %s3, %s268
      %p270 = pneg %p134
      %p271 = pneg %p131
      %p272 = scmp.lt.s32.totalorder %s19, 1
      %s273 = scalar_select %p272, %s19, 1
      %s274 = smul.addr %s273, 8
      %s275 = smul.addr %s274, 4
      %s276 = scalar_lea.vmem %s4, %s275
      %p277 = pneg %p160
      %p278 = pneg %p157
      %p279 = scmp.lt.s32.totalorder %s19, 1
      %s280 = scalar_select %p279, %s19, 1
      %s281 = smul.addr %s280, 2
      %s282 = smul.addr %s281, 4
      %s283 = scalar_lea.vmem %s5, %s282
      %p284 = pneg %p186
      %p285 = pneg %p183
      %p286 = scmp.lt.s32.totalorder %s19, 1
      %s287 = scalar_select %p286, %s19, 1
      %s288 = smul.addr %s287, 2
      %s289 = smul.addr %s288, 4
      %s290 = scalar_lea.vmem %s6, %s289
      %p291 = pneg %p212
      %p292 = pneg %p209
      %p293 = scmp.lt.s32.totalorder %s19, 1
      %s294 = scalar_select %p293, %s19, 1
      %s295 = smul.addr %s294, 2
      %s296 = scalar_lea.vmem %s7, %s295
      %p297 = scmp.lt.s32.totalorder %s19, 1
      %s298 = scalar_select %p297, %s19, 1
      %s299 = smul.addr %s298, 32
      %s300 = smul.addr %s299, 8
      %s301 = scalar_lea.vmem %s0, %s300
      %p302 = scmp.lt.s32.totalorder %s19, 1
      %s303 = scalar_select %p302, %s19, 1
      %s304 = smul.addr %s303, 8
      %s305 = smul.addr %s304, 4
      %s306 = scalar_lea.vmem %s3, %s305
      %p307 = scmp.lt.s32.totalorder %s19, 1
      %s308 = scalar_select %p307, %s19, 1
      %s309 = smul.addr %s308, 8
      %s310 = smul.addr %s309, 4
      %s311 = scalar_lea.vmem %s4, %s310
      %p312 = scmp.lt.s32.totalorder %s19, 1
      %s313 = scalar_select %p312, %s19, 1
      %s314 = smul.addr %s313, 2
      %s315 = smul.addr %s314, 4
      %s316 = scalar_lea.vmem %s5, %s315
      %p317 = scmp.lt.s32.totalorder %s19, 1
      %s318 = scalar_select %p317, %s19, 1
      %s319 = smul.addr %s318, 2
      %s320 = smul.addr %s319, 4
      %s321 = scalar_lea.vmem %s6, %s320
      %p322 = scmp.lt.s32.totalorder %s19, 1
      %s323 = scalar_select %p322, %s19, 1
      %s324 = smul.addr %s323, 2
      %s325 = scalar_lea.vmem %s7, %s324
      %v326 = vld [vmem:[%s301] ss:$2 sm:$0xff]
      %327 = vst [vmem:[#allocation3] sm:$0xff] %v326
      %s328 = scalar_lea.vmem %s301, 32
      %v329 = vld [vmem:[%s328] ss:$2 sm:$0xff]
      %330 = vst [vmem:[#allocation3 + $0x8] sm:$0xff] %v329
      %s331 = scalar_lea.vmem %s301, 64
      %v332 = vld [vmem:[%s331] ss:$2 sm:$0xff]
      %333 = vst [vmem:[#allocation3 + $0x10] sm:$0xff] %v332
      %s334 = scalar_lea.vmem %s301, 96
      %v335 = vld [vmem:[%s334] ss:$2 sm:$0xff]
      %336 = vst [vmem:[#allocation3 + $0x18] sm:$0xff] %v335
      %s337 = scalar_lea.vmem %s301, 128
      %v338 = vld [vmem:[%s337] ss:$2 sm:$0xff]
      %339 = vst [vmem:[#allocation3 + $0x20] sm:$0xff] %v338
      %s340 = scalar_lea.vmem %s301, 160
      %v341 = vld [vmem:[%s340] ss:$2 sm:$0xff]
      %342 = vst [vmem:[#allocation3 + $0x28] sm:$0xff] %v341
      %s343 = scalar_lea.vmem %s301, 192
      %v344 = vld [vmem:[%s343] ss:$2 sm:$0xff]
      %345 = vst [vmem:[#allocation3 + $0x30] sm:$0xff] %v344
      %s346 = scalar_lea.vmem %s301, 224
      %v347 = vld [vmem:[%s346] ss:$2 sm:$0xff]
      %348 = vst [vmem:[#allocation3 + $0x38] sm:$0xff] %v347
      %v349 = vld [vmem:[#allocation3] sm:$0xff]
      %v350 = vld [vmem:[#allocation3 + $0x8] sm:$0xff]
      %v351 = vld [vmem:[#allocation3 + $0x10] sm:$0xff]
      %v352 = vld [vmem:[#allocation3 + $0x18] sm:$0xff]
      %v353 = vld [vmem:[#allocation3 + $0x20] sm:$0xff]
      %v354 = vld [vmem:[#allocation3 + $0x28] sm:$0xff]
      %v355 = vld [vmem:[#allocation3 + $0x30] sm:$0xff]
      %v356 = vld [vmem:[#allocation3 + $0x38] sm:$0xff]
      %v357 = vpack.c.bf16 %v350, %v349
      %v358 = vpack.c.bf16 %v352, %v351
      %v359 = vpack.c.bf16 %v354, %v353
      %v360 = vpack.c.bf16 %v356, %v355
      %v361 = vld [vmem:[%s1] sm:$0xf]
      %v362 = vld [vmem:[%s1 + $0x4] sm:$0xf]
      %v363 = vld [vmem:[%s1 + $0x8] sm:$0xf]
      %v364 = vld [vmem:[%s1 + $0xc] sm:$0xf]
      %v365 = vld [vmem:[%s1 + $0x10] sm:$0xf]
      %v366 = vld [vmem:[%s1 + $0x14] sm:$0xf]
      %v367 = vld [vmem:[%s1 + $0x18] sm:$0xf]
      %v368 = vld [vmem:[%s1 + $0x1c] sm:$0xf]
      %v369 = vld [vmem:[%s1 + $0x20] sm:$0xf]
      %v370 = vld [vmem:[%s1 + $0x24] sm:$0xf]
      %v371 = vld [vmem:[%s1 + $0x28] sm:$0xf]
      %v372 = vld [vmem:[%s1 + $0x2c] sm:$0xf]
      %v373 = vld [vmem:[%s1 + $0x30] sm:$0xf]
      %v374 = vld [vmem:[%s1 + $0x34] sm:$0xf]
      %v375 = vld [vmem:[%s1 + $0x38] sm:$0xf]
      %v376 = vld [vmem:[%s1 + $0x3c] sm:$0xf]
      %v377 = vld [vmem:[%s2] sm:$0x1]
      %v379 = vperm.slane %v377, 0
      %v397 = vunpack.c.l.b16 %v361
      %v398 = vunpack.c.l.b16 %v362
      %v399 = vunpack.c.l.b16 %v363
      %v400 = vunpack.c.l.b16 %v364
      %v401 = vunpack.c.l.b16 %v365
      %v402 = vunpack.c.l.b16 %v366
      %v403 = vunpack.c.l.b16 %v367
      %v404 = vunpack.c.l.b16 %v368
      %v405 = vunpack.c.l.b16 %v369
      %v406 = vunpack.c.l.b16 %v370
      %v407 = vunpack.c.l.b16 %v371
      %v408 = vunpack.c.l.b16 %v372
      %v409 = vunpack.c.l.b16 %v373
      %v410 = vunpack.c.l.b16 %v374
      %v411 = vunpack.c.l.b16 %v375
      %v412 = vunpack.c.l.b16 %v376
      %v413 = vpack.c.b16 %v398, %v397
      %v414 = vpack.c.b16 %v400, %v399
      %v415 = vpack.c.b16 %v402, %v401
      %v416 = vpack.c.b16 %v404, %v403
      %v417 = vpack.c.b16 %v406, %v405
      %v418 = vpack.c.b16 %v408, %v407
      %v419 = vpack.c.b16 %v410, %v409
      %v420 = vpack.c.b16 %v412, %v411
      %429 = vmatpush.bf16.msra.mxu0 %v420
      %430 = vmatpush.bf16.msra.mxu0 %v419
      %431 = vmatpush.bf16.msra.mxu0 %v418
      %432 = vmatpush.bf16.msra.mxu0 %v417
      %433 = vmatpush.bf16.msra.mxu0 %v416
      %434 = vmatpush.bf16.msra.mxu0 %v415
      %435 = vmatpush.bf16.msra.mxu0 %v414
      %436 = vmatpush.bf16.msra.mxu0 %v413
      %437 = vmatmul.bf16.gmra.mxu0 %v357
      %v438 = vpop.f32.mrf.mxu0
      %v439 = vadd.f32 %v379, %v438
      %v440 = vpop.f32.mrf.mxu0
      %v441 = vadd.f32 %v379, %v440
      %442 = vmatmul.bf16.gmra.mxu0 %v358
      %v443 = vpop.f32.mrf.mxu0
      %v444 = vadd.f32 %v379, %v443
      %v445 = vpop.f32.mrf.mxu0
      %v446 = vadd.f32 %v379, %v445
      %447 = vmatmul.bf16.gmra.mxu0 %v359
      %v448 = vpop.f32.mrf.mxu0
      %v449 = vadd.f32 %v379, %v448
      %v450 = vpop.f32.mrf.mxu0
      %v451 = vadd.f32 %v379, %v450
      %452 = vmatmul.bf16.gmra.mxu0 %v360
      %v453 = vpop.f32.mrf.mxu0
      %v454 = vadd.f32 %v379, %v453
      %v455 = vpop.f32.mrf.mxu0
      %v456 = vadd.f32 %v379, %v455
      %457 = vdwg.mxu0
      %v458 = vxor.u32 %v439, 2147483648
      %v459 = vxor.u32 %v441, 2147483648
      %v460 = vxor.u32 %v444, 2147483648
      %v461 = vxor.u32 %v446, 2147483648
      %v462 = vxor.u32 %v449, 2147483648
      %v463 = vxor.u32 %v451, 2147483648
      %v464 = vxor.u32 %v454, 2147483648
      %v465 = vxor.u32 %v456, 2147483648
      %v466 = vmul.f32 %v458, 1.442695
      %v467 = vpow.pop %v466
      %v468 = vmul.f32 %v459, 1.442695
      %v469 = vpow.pop %v468
      %v470 = vmul.f32 %v460, 1.442695
      %v471 = vpow.pop %v470
      %v472 = vmul.f32 %v461, 1.442695
      %v473 = vpow.pop %v472
      %v474 = vmul.f32 %v462, 1.442695
      %v475 = vpow.pop %v474
      %v476 = vmul.f32 %v463, 1.442695
      %v477 = vpow.pop %v476
      %v478 = vmul.f32 %v464, 1.442695
      %v479 = vpow.pop %v478
      %v480 = vmul.f32 %v465, 1.442695
      %v481 = vpow.pop %v480
      %v482 = vadd.f32 %v467, 1.0
      %v483 = vadd.f32 %v469, 1.0
      %v484 = vadd.f32 %v471, 1.0
      %v485 = vadd.f32 %v473, 1.0
      %v486 = vadd.f32 %v475, 1.0
      %v487 = vadd.f32 %v477, 1.0
      %v488 = vadd.f32 %v479, 1.0
      %v489 = vadd.f32 %v481, 1.0
      %v490 = vrcp.pop %v482
      %v491 = vmul.f32 %v482, %v490
      %v492 = vsub.f32 1.0, %v491
      %v493 = vmul.f32 %v490, %v492
      %v494 = vadd.f32 %v490, %v493
      %vm495 = vweird.f32 %v482
      %vm496 = vweird.f32 %v490
      %vm497 = vmor %vm495, %vm496
      %v498 = vsel %vm497, %v490, %v494
      %v499 = vand.u32 2147483647, %v482
      %vm500 = vcmp.eq.f32.partialorder %v499, 8.507059e+37
      %v501 = vand.u32 %v482, 2147483648
      %v502 = vor.u32 1.1754944e-38, %v501
      %v503 = vsel %vm500, %v502, %v498
      %v504 = vmul.f32 1.0, %v503
      %v505 = vrcp.pop %v483
      %v506 = vmul.f32 %v483, %v505
      %v507 = vsub.f32 1.0, %v506
      %v508 = vmul.f32 %v505, %v507
      %v509 = vadd.f32 %v505, %v508
      %vm510 = vweird.f32 %v483
      %vm511 = vweird.f32 %v505
      %vm512 = vmor %vm510, %vm511
      %v513 = vsel %vm512, %v505, %v509
      %v514 = vand.u32 2147483647, %v483
      %vm515 = vcmp.eq.f32.partialorder %v514, 8.507059e+37
      %v516 = vand.u32 %v483, 2147483648
      %v517 = vor.u32 1.1754944e-38, %v516
      %v518 = vsel %vm515, %v517, %v513
      %v519 = vmul.f32 1.0, %v518
      %v520 = vrcp.pop %v484
      %v521 = vmul.f32 %v484, %v520
      %v522 = vsub.f32 1.0, %v521
      %v523 = vmul.f32 %v520, %v522
      %v524 = vadd.f32 %v520, %v523
      %vm525 = vweird.f32 %v484
      %vm526 = vweird.f32 %v520
      %vm527 = vmor %vm525, %vm526
      %v528 = vsel %vm527, %v520, %v524
      %v529 = vand.u32 2147483647, %v484
      %vm530 = vcmp.eq.f32.partialorder %v529, 8.507059e+37
      %v531 = vand.u32 %v484, 2147483648
      %v532 = vor.u32 1.1754944e-38, %v531
      %v533 = vsel %vm530, %v532, %v528
      %v534 = vmul.f32 1.0, %v533
      %v535 = vrcp.pop %v485
      %v536 = vmul.f32 %v485, %v535
      %v537 = vsub.f32 1.0, %v536
      %v538 = vmul.f32 %v535, %v537
      %v539 = vadd.f32 %v535, %v538
      %vm540 = vweird.f32 %v485
      %vm541 = vweird.f32 %v535
      %vm542 = vmor %vm540, %vm541
      %v543 = vsel %vm542, %v535, %v539
      %v544 = vand.u32 2147483647, %v485
      %vm545 = vcmp.eq.f32.partialorder %v544, 8.507059e+37
      %v546 = vand.u32 %v485, 2147483648
      %v547 = vor.u32 1.1754944e-38, %v546
      %v548 = vsel %vm545, %v547, %v543
      %v549 = vmul.f32 1.0, %v548
      %v550 = vrcp.pop %v486
      %v551 = vmul.f32 %v486, %v550
      %v552 = vsub.f32 1.0, %v551
      %v553 = vmul.f32 %v550, %v552
      %v554 = vadd.f32 %v550, %v553
      %vm555 = vweird.f32 %v486
      %vm556 = vweird.f32 %v550
      %vm557 = vmor %vm555, %vm556
      %v558 = vsel %vm557, %v550, %v554
      %v559 = vand.u32 2147483647, %v486
      %vm560 = vcmp.eq.f32.partialorder %v559, 8.507059e+37
      %v561 = vand.u32 %v486, 2147483648
      %v562 = vor.u32 1.1754944e-38, %v561
      %v563 = vsel %vm560, %v562, %v558
      %v564 = vmul.f32 1.0, %v563
      %v565 = vrcp.pop %v487
      %v566 = vmul.f32 %v487, %v565
      %v567 = vsub.f32 1.0, %v566
      %v568 = vmul.f32 %v565, %v567
      %v569 = vadd.f32 %v565, %v568
      %vm570 = vweird.f32 %v487
      %vm571 = vweird.f32 %v565
      %vm572 = vmor %vm570, %vm571
      %v573 = vsel %vm572, %v565, %v569
      %v574 = vand.u32 2147483647, %v487
      %vm575 = vcmp.eq.f32.partialorder %v574, 8.507059e+37
      %v576 = vand.u32 %v487, 2147483648
      %v577 = vor.u32 1.1754944e-38, %v576
      %v578 = vsel %vm575, %v577, %v573
      %v579 = vmul.f32 1.0, %v578
      %v580 = vrcp.pop %v488
      %v581 = vmul.f32 %v488, %v580
      %v582 = vsub.f32 1.0, %v581
      %v583 = vmul.f32 %v580, %v582
      %v584 = vadd.f32 %v580, %v583
      %vm585 = vweird.f32 %v488
      %vm586 = vweird.f32 %v580
      %vm587 = vmor %vm585, %vm586
      %v588 = vsel %vm587, %v580, %v584
      %v589 = vand.u32 2147483647, %v488
      %vm590 = vcmp.eq.f32.partialorder %v589, 8.507059e+37
      %v591 = vand.u32 %v488, 2147483648
      %v592 = vor.u32 1.1754944e-38, %v591
      %v593 = vsel %vm590, %v592, %v588
      %v594 = vmul.f32 1.0, %v593
      %v595 = vrcp.pop %v489
      %v596 = vmul.f32 %v489, %v595
      %v597 = vsub.f32 1.0, %v596
      %v598 = vmul.f32 %v595, %v597
      %v599 = vadd.f32 %v595, %v598
      %vm600 = vweird.f32 %v489
      %vm601 = vweird.f32 %v595
      %vm602 = vmor %vm600, %vm601
      %v603 = vsel %vm602, %v595, %v599
      %v604 = vand.u32 2147483647, %v489
      %vm605 = vcmp.eq.f32.partialorder %v604, 8.507059e+37
      %v606 = vand.u32 %v489, 2147483648
      %v607 = vor.u32 1.1754944e-38, %v606
      %v608 = vsel %vm605, %v607, %v603
      %v609 = vmul.f32 1.0, %v608
      %v610 = vmul.f32 %v439, %v504
      %v611 = vmul.f32 %v441, %v519
      %v612 = vmul.f32 %v444, %v534
      %v613 = vmul.f32 %v446, %v549
      %v614 = vmul.f32 %v449, %v564
      %v615 = vmul.f32 %v451, %v579
      %v616 = vmul.f32 %v454, %v594
      %v617 = vmul.f32 %v456, %v609
      %v618 = vpack.c.bf16 %v611, %v610
      %v619 = vpack.c.bf16 %v613, %v612
      %v620 = vpack.c.bf16 %v615, %v614
      %v621 = vpack.c.bf16 %v617, %v616
      %s622 = scalar_lea.vmem %s1, 64
      %v623 = vld [vmem:[%s622] sm:$0xf]
      %v624 = vld [vmem:[%s622 + $0x4] sm:$0xf]
      %v625 = vld [vmem:[%s622 + $0x8] sm:$0xf]
      %v626 = vld [vmem:[%s622 + $0xc] sm:$0xf]
      %v627 = vld [vmem:[%s622 + $0x10] sm:$0xf]
      %v628 = vld [vmem:[%s622 + $0x14] sm:$0xf]
      %v629 = vld [vmem:[%s622 + $0x18] sm:$0xf]
      %v630 = vld [vmem:[%s622 + $0x1c] sm:$0xf]
      %v631 = vld [vmem:[%s622 + $0x20] sm:$0xf]
      %v632 = vld [vmem:[%s622 + $0x24] sm:$0xf]
      %v633 = vld [vmem:[%s622 + $0x28] sm:$0xf]
      %v634 = vld [vmem:[%s622 + $0x2c] sm:$0xf]
      %v635 = vld [vmem:[%s622 + $0x30] sm:$0xf]
      %v636 = vld [vmem:[%s622 + $0x34] sm:$0xf]
      %v637 = vld [vmem:[%s622 + $0x38] sm:$0xf]
      %v638 = vld [vmem:[%s622 + $0x3c] sm:$0xf]
      %s639 = scalar_lea.vmem %s2, 1
      %v640 = vld [vmem:[%s639] sm:$0x1]
      %v642 = vperm.slane %v640, 0
      %v660 = vunpack.c.l.b16 %v623
      %v661 = vunpack.c.l.b16 %v624
      %v662 = vunpack.c.l.b16 %v625
      %v663 = vunpack.c.l.b16 %v626
      %v664 = vunpack.c.l.b16 %v627
      %v665 = vunpack.c.l.b16 %v628
      %v666 = vunpack.c.l.b16 %v629
      %v667 = vunpack.c.l.b16 %v630
      %v668 = vunpack.c.l.b16 %v631
      %v669 = vunpack.c.l.b16 %v632
      %v670 = vunpack.c.l.b16 %v633
      %v671 = vunpack.c.l.b16 %v634
      %v672 = vunpack.c.l.b16 %v635
      %v673 = vunpack.c.l.b16 %v636
      %v674 = vunpack.c.l.b16 %v637
      %v675 = vunpack.c.l.b16 %v638
      %v676 = vpack.c.b16 %v661, %v660
      %v677 = vpack.c.b16 %v663, %v662
      %v678 = vpack.c.b16 %v665, %v664
      %v679 = vpack.c.b16 %v667, %v666
      %v680 = vpack.c.b16 %v669, %v668
      %v681 = vpack.c.b16 %v671, %v670
      %v682 = vpack.c.b16 %v673, %v672
      %v683 = vpack.c.b16 %v675, %v674
      %692 = vmatpush.bf16.msra.mxu0 %v683
      %693 = vmatpush.bf16.msra.mxu0 %v682
      %694 = vmatpush.bf16.msra.mxu0 %v681
      %695 = vmatpush.bf16.msra.mxu0 %v680
      %696 = vmatpush.bf16.msra.mxu0 %v679
      %697 = vmatpush.bf16.msra.mxu0 %v678
      %698 = vmatpush.bf16.msra.mxu0 %v677
      %699 = vmatpush.bf16.msra.mxu0 %v676
      %700 = vmatmul.bf16.gmra.mxu0 %v618
      %v701 = vpop.f32.mrf.mxu0
      %v702 = vadd.f32 %v642, %v701
      %v703 = vpop.f32.mrf.mxu0
      %v704 = vadd.f32 %v642, %v703
      %705 = vmatmul.bf16.gmra.mxu0 %v619
      %v706 = vpop.f32.mrf.mxu0
      %v707 = vadd.f32 %v642, %v706
      %v708 = vpop.f32.mrf.mxu0
      %v709 = vadd.f32 %v642, %v708
      %710 = vmatmul.bf16.gmra.mxu0 %v620
      %v711 = vpop.f32.mrf.mxu0
      %v712 = vadd.f32 %v642, %v711
      %v713 = vpop.f32.mrf.mxu0
      %v714 = vadd.f32 %v642, %v713
      %715 = vmatmul.bf16.gmra.mxu0 %v621
      %v716 = vpop.f32.mrf.mxu0
      %v717 = vadd.f32 %v642, %v716
      %v718 = vpop.f32.mrf.mxu0
      %v719 = vadd.f32 %v642, %v718
      %720 = vdwg.mxu0
      %v721 = vxor.u32 %v702, 2147483648
      %v722 = vxor.u32 %v704, 2147483648
      %v723 = vxor.u32 %v707, 2147483648
      %v724 = vxor.u32 %v709, 2147483648
      %v725 = vxor.u32 %v712, 2147483648
      %v726 = vxor.u32 %v714, 2147483648
      %v727 = vxor.u32 %v717, 2147483648
      %v728 = vxor.u32 %v719, 2147483648
      %v729 = vmul.f32 %v721, 1.442695
      %v730 = vpow.pop %v729
      %v731 = vmul.f32 %v722, 1.442695
      %v732 = vpow.pop %v731
      %v733 = vmul.f32 %v723, 1.442695
      %v734 = vpow.pop %v733
      %v735 = vmul.f32 %v724, 1.442695
      %v736 = vpow.pop %v735
      %v737 = vmul.f32 %v725, 1.442695
      %v738 = vpow.pop %v737
      %v739 = vmul.f32 %v726, 1.442695
      %v740 = vpow.pop %v739
      %v741 = vmul.f32 %v727, 1.442695
      %v742 = vpow.pop %v741
      %v743 = vmul.f32 %v728, 1.442695
      %v744 = vpow.pop %v743
      %v745 = vadd.f32 %v730, 1.0
      %v746 = vadd.f32 %v732, 1.0
      %v747 = vadd.f32 %v734, 1.0
      %v748 = vadd.f32 %v736, 1.0
      %v749 = vadd.f32 %v738, 1.0
      %v750 = vadd.f32 %v740, 1.0
      %v751 = vadd.f32 %v742, 1.0
      %v752 = vadd.f32 %v744, 1.0
      %v753 = vrcp.pop %v745
      %v754 = vmul.f32 %v745, %v753
      %v755 = vsub.f32 1.0, %v754
      %v756 = vmul.f32 %v753, %v755
      %v757 = vadd.f32 %v753, %v756
      %vm758 = vweird.f32 %v745
      %vm759 = vweird.f32 %v753
      %vm760 = vmor %vm758, %vm759
      %v761 = vsel %vm760, %v753, %v757
      %v762 = vand.u32 2147483647, %v745
      %vm763 = vcmp.eq.f32.partialorder %v762, 8.507059e+37
      %v764 = vand.u32 %v745, 2147483648
      %v765 = vor.u32 1.1754944e-38, %v764
      %v766 = vsel %vm763, %v765, %v761
      %v767 = vmul.f32 1.0, %v766
      %v768 = vrcp.pop %v746
      %v769 = vmul.f32 %v746, %v768
      %v770 = vsub.f32 1.0, %v769
      %v771 = vmul.f32 %v768, %v770
      %v772 = vadd.f32 %v768, %v771
      %vm773 = vweird.f32 %v746
      %vm774 = vweird.f32 %v768
      %vm775 = vmor %vm773, %vm774
      %v776 = vsel %vm775, %v768, %v772
      %v777 = vand.u32 2147483647, %v746
      %vm778 = vcmp.eq.f32.partialorder %v777, 8.507059e+37
      %v779 = vand.u32 %v746, 2147483648
      %v780 = vor.u32 1.1754944e-38, %v779
      %v781 = vsel %vm778, %v780, %v776
      %v782 = vmul.f32 1.0, %v781
      %v783 = vrcp.pop %v747
      %v784 = vmul.f32 %v747, %v783
      %v785 = vsub.f32 1.0, %v784
      %v786 = vmul.f32 %v783, %v785
      %v787 = vadd.f32 %v783, %v786
      %vm788 = vweird.f32 %v747
      %vm789 = vweird.f32 %v783
      %vm790 = vmor %vm788, %vm789
      %v791 = vsel %vm790, %v783, %v787
      %v792 = vand.u32 2147483647, %v747
      %vm793 = vcmp.eq.f32.partialorder %v792, 8.507059e+37
      %v794 = vand.u32 %v747, 2147483648
      %v795 = vor.u32 1.1754944e-38, %v794
      %v796 = vsel %vm793, %v795, %v791
      %v797 = vmul.f32 1.0, %v796
      %v798 = vrcp.pop %v748
      %v799 = vmul.f32 %v748, %v798
      %v800 = vsub.f32 1.0, %v799
      %v801 = vmul.f32 %v798, %v800
      %v802 = vadd.f32 %v798, %v801
      %vm803 = vweird.f32 %v748
      %vm804 = vweird.f32 %v798
      %vm805 = vmor %vm803, %vm804
      %v806 = vsel %vm805, %v798, %v802
      %v807 = vand.u32 2147483647, %v748
      %vm808 = vcmp.eq.f32.partialorder %v807, 8.507059e+37
      %v809 = vand.u32 %v748, 2147483648
      %v810 = vor.u32 1.1754944e-38, %v809
      %v811 = vsel %vm808, %v810, %v806
      %v812 = vmul.f32 1.0, %v811
      %v813 = vrcp.pop %v749
      %v814 = vmul.f32 %v749, %v813
      %v815 = vsub.f32 1.0, %v814
      %v816 = vmul.f32 %v813, %v815
      %v817 = vadd.f32 %v813, %v816
      %vm818 = vweird.f32 %v749
      %vm819 = vweird.f32 %v813
      %vm820 = vmor %vm818, %vm819
      %v821 = vsel %vm820, %v813, %v817
      %v822 = vand.u32 2147483647, %v749
      %vm823 = vcmp.eq.f32.partialorder %v822, 8.507059e+37
      %v824 = vand.u32 %v749, 2147483648
      %v825 = vor.u32 1.1754944e-38, %v824
      %v826 = vsel %vm823, %v825, %v821
      %v827 = vmul.f32 1.0, %v826
      %v828 = vrcp.pop %v750
      %v829 = vmul.f32 %v750, %v828
      %v830 = vsub.f32 1.0, %v829
      %v831 = vmul.f32 %v828, %v830
      %v832 = vadd.f32 %v828, %v831
      %vm833 = vweird.f32 %v750
      %vm834 = vweird.f32 %v828
      %vm835 = vmor %vm833, %vm834
      %v836 = vsel %vm835, %v828, %v832
      %v837 = vand.u32 2147483647, %v750
      %vm838 = vcmp.eq.f32.partialorder %v837, 8.507059e+37
      %v839 = vand.u32 %v750, 2147483648
      %v840 = vor.u32 1.1754944e-38, %v839
      %v841 = vsel %vm838, %v840, %v836
      %v842 = vmul.f32 1.0, %v841
      %v843 = vrcp.pop %v751
      %v844 = vmul.f32 %v751, %v843
      %v845 = vsub.f32 1.0, %v844
      %v846 = vmul.f32 %v843, %v845
      %v847 = vadd.f32 %v843, %v846
      %vm848 = vweird.f32 %v751
      %vm849 = vweird.f32 %v843
      %vm850 = vmor %vm848, %vm849
      %v851 = vsel %vm850, %v843, %v847
      %v852 = vand.u32 2147483647, %v751
      %vm853 = vcmp.eq.f32.partialorder %v852, 8.507059e+37
      %v854 = vand.u32 %v751, 2147483648
      %v855 = vor.u32 1.1754944e-38, %v854
      %v856 = vsel %vm853, %v855, %v851
      %v857 = vmul.f32 1.0, %v856
      %v858 = vrcp.pop %v752
      %v859 = vmul.f32 %v752, %v858
      %v860 = vsub.f32 1.0, %v859
      %v861 = vmul.f32 %v858, %v860
      %v862 = vadd.f32 %v858, %v861
      %vm863 = vweird.f32 %v752
      %vm864 = vweird.f32 %v858
      %vm865 = vmor %vm863, %vm864
      %v866 = vsel %vm865, %v858, %v862
      %v867 = vand.u32 2147483647, %v752
      %vm868 = vcmp.eq.f32.partialorder %v867, 8.507059e+37
      %v869 = vand.u32 %v752, 2147483648
      %v870 = vor.u32 1.1754944e-38, %v869
      %v871 = vsel %vm868, %v870, %v866
      %v872 = vmul.f32 1.0, %v871
      %v873 = vmul.f32 %v702, %v767
      %v874 = vmul.f32 %v704, %v782
      %v875 = vmul.f32 %v707, %v797
      %v876 = vmul.f32 %v709, %v812
      %v877 = vmul.f32 %v712, %v827
      %v878 = vmul.f32 %v714, %v842
      %v879 = vmul.f32 %v717, %v857
      %v880 = vmul.f32 %v719, %v872
      %v881 = vpack.c.bf16 %v873, %v873
      %v882 = vpack.c.bf16 %v874, %v874
      %v883 = vpack.c.bf16 %v875, %v875
      %v884 = vpack.c.bf16 %v876, %v876
      %v885 = vpack.c.bf16 %v877, %v877
      %v886 = vpack.c.bf16 %v878, %v878
      %v887 = vpack.c.bf16 %v879, %v879
      %v888 = vpack.c.bf16 %v880, %v880
      %889 = vst [vmem:[%s306] sm:$0xf] %v881
      %890 = vst [vmem:[%s306 + $0x4] sm:$0xf] %v882
      %891 = vst [vmem:[%s306 + $0x8] sm:$0xf] %v883
      %892 = vst [vmem:[%s306 + $0xc] sm:$0xf] %v884
      %893 = vst [vmem:[%s306 + $0x10] sm:$0xf] %v885
      %894 = vst [vmem:[%s306 + $0x14] sm:$0xf] %v886
      %895 = vst [vmem:[%s306 + $0x18] sm:$0xf] %v887
      %896 = vst [vmem:[%s306 + $0x1c] sm:$0xf] %v888
      %s897 = scalar_lea.vmem %s1, 128
      %v898 = vld [vmem:[%s897] sm:$0xf]
      %v899 = vld [vmem:[%s897 + $0x4] sm:$0xf]
      %v900 = vld [vmem:[%s897 + $0x8] sm:$0xf]
      %v901 = vld [vmem:[%s897 + $0xc] sm:$0xf]
      %v902 = vld [vmem:[%s897 + $0x10] sm:$0xf]
      %v903 = vld [vmem:[%s897 + $0x14] sm:$0xf]
      %v904 = vld [vmem:[%s897 + $0x18] sm:$0xf]
      %v905 = vld [vmem:[%s897 + $0x1c] sm:$0xf]
      %v906 = vld [vmem:[%s897 + $0x20] sm:$0xf]
      %v907 = vld [vmem:[%s897 + $0x24] sm:$0xf]
      %v908 = vld [vmem:[%s897 + $0x28] sm:$0xf]
      %v909 = vld [vmem:[%s897 + $0x2c] sm:$0xf]
      %v910 = vld [vmem:[%s897 + $0x30] sm:$0xf]
      %v911 = vld [vmem:[%s897 + $0x34] sm:$0xf]
      %v912 = vld [vmem:[%s897 + $0x38] sm:$0xf]
      %v913 = vld [vmem:[%s897 + $0x3c] sm:$0xf]
      %s914 = scalar_lea.vmem %s2, 2
      %v915 = vld [vmem:[%s914] sm:$0x1]
      %v917 = vperm.slane %v915, 0
      %v935 = vunpack.c.l.b16 %v898
      %v936 = vunpack.c.l.b16 %v899
      %v937 = vunpack.c.l.b16 %v900
      %v938 = vunpack.c.l.b16 %v901
      %v939 = vunpack.c.l.b16 %v902
      %v940 = vunpack.c.l.b16 %v903
      %v941 = vunpack.c.l.b16 %v904
      %v942 = vunpack.c.l.b16 %v905
      %v943 = vunpack.c.l.b16 %v906
      %v944 = vunpack.c.l.b16 %v907
      %v945 = vunpack.c.l.b16 %v908
      %v946 = vunpack.c.l.b16 %v909
      %v947 = vunpack.c.l.b16 %v910
      %v948 = vunpack.c.l.b16 %v911
      %v949 = vunpack.c.l.b16 %v912
      %v950 = vunpack.c.l.b16 %v913
      %v951 = vpack.c.b16 %v936, %v935
      %v952 = vpack.c.b16 %v938, %v937
      %v953 = vpack.c.b16 %v940, %v939
      %v954 = vpack.c.b16 %v942, %v941
      %v955 = vpack.c.b16 %v944, %v943
      %v956 = vpack.c.b16 %v946, %v945
      %v957 = vpack.c.b16 %v948, %v947
      %v958 = vpack.c.b16 %v950, %v949
      %967 = vmatpush.bf16.msra.mxu0 %v958
      %968 = vmatpush.bf16.msra.mxu0 %v957
      %969 = vmatpush.bf16.msra.mxu0 %v956
      %970 = vmatpush.bf16.msra.mxu0 %v955
      %971 = vmatpush.bf16.msra.mxu0 %v954
      %972 = vmatpush.bf16.msra.mxu0 %v953
      %973 = vmatpush.bf16.msra.mxu0 %v952
      %974 = vmatpush.bf16.msra.mxu0 %v951
      %975 = vmatmul.bf16.gmra.mxu0 %v618
      %v976 = vpop.f32.mrf.mxu0
      %v977 = vadd.f32 %v917, %v976
      %v978 = vpop.f32.mrf.mxu0
      %v979 = vadd.f32 %v917, %v978
      %980 = vmatmul.bf16.gmra.mxu0 %v619
      %v981 = vpop.f32.mrf.mxu0
      %v982 = vadd.f32 %v917, %v981
      %v983 = vpop.f32.mrf.mxu0
      %v984 = vadd.f32 %v917, %v983
      %985 = vmatmul.bf16.gmra.mxu0 %v620
      %v986 = vpop.f32.mrf.mxu0
      %v987 = vadd.f32 %v917, %v986
      %v988 = vpop.f32.mrf.mxu0
      %v989 = vadd.f32 %v917, %v988
      %990 = vmatmul.bf16.gmra.mxu0 %v621
      %v991 = vpop.f32.mrf.mxu0
      %v992 = vadd.f32 %v917, %v991
      %v993 = vpop.f32.mrf.mxu0
      %v994 = vadd.f32 %v917, %v993
      %995 = vdwg.mxu0
      %v996 = vxor.u32 %v977, 2147483648
      %v997 = vxor.u32 %v979, 2147483648
      %v998 = vxor.u32 %v982, 2147483648
      %v999 = vxor.u32 %v984, 2147483648
      %v1000 = vxor.u32 %v987, 2147483648
      %v1001 = vxor.u32 %v989, 2147483648
      %v1002 = vxor.u32 %v992, 2147483648
      %v1003 = vxor.u32 %v994, 2147483648
      %v1004 = vmul.f32 %v996, 1.442695
      %v1005 = vpow.pop %v1004
      %v1006 = vmul.f32 %v997, 1.442695
      %v1007 = vpow.pop %v1006
      %v1008 = vmul.f32 %v998, 1.442695
      %v1009 = vpow.pop %v1008
      %v1010 = vmul.f32 %v999, 1.442695
      %v1011 = vpow.pop %v1010
      %v1012 = vmul.f32 %v1000, 1.442695
      %v1013 = vpow.pop %v1012
      %v1014 = vmul.f32 %v1001, 1.442695
      %v1015 = vpow.pop %v1014
      %v1016 = vmul.f32 %v1002, 1.442695
      %v1017 = vpow.pop %v1016
      %v1018 = vmul.f32 %v1003, 1.442695
      %v1019 = vpow.pop %v1018
      %v1020 = vadd.f32 %v1005, 1.0
      %v1021 = vadd.f32 %v1007, 1.0
      %v1022 = vadd.f32 %v1009, 1.0
      %v1023 = vadd.f32 %v1011, 1.0
      %v1024 = vadd.f32 %v1013, 1.0
      %v1025 = vadd.f32 %v1015, 1.0
      %v1026 = vadd.f32 %v1017, 1.0
      %v1027 = vadd.f32 %v1019, 1.0
      %v1028 = vrcp.pop %v1020
      %v1029 = vmul.f32 %v1020, %v1028
      %v1030 = vsub.f32 1.0, %v1029
      %v1031 = vmul.f32 %v1028, %v1030
      %v1032 = vadd.f32 %v1028, %v1031
      %vm1033 = vweird.f32 %v1020
      %vm1034 = vweird.f32 %v1028
      %vm1035 = vmor %vm1033, %vm1034
      %v1036 = vsel %vm1035, %v1028, %v1032
      %v1037 = vand.u32 2147483647, %v1020
      %vm1038 = vcmp.eq.f32.partialorder %v1037, 8.507059e+37
      %v1039 = vand.u32 %v1020, 2147483648
      %v1040 = vor.u32 1.1754944e-38, %v1039
      %v1041 = vsel %vm1038, %v1040, %v1036
      %v1042 = vmul.f32 1.0, %v1041
      %v1043 = vrcp.pop %v1021
      %v1044 = vmul.f32 %v1021, %v1043
      %v1045 = vsub.f32 1.0, %v1044
      %v1046 = vmul.f32 %v1043, %v1045
      %v1047 = vadd.f32 %v1043, %v1046
      %vm1048 = vweird.f32 %v1021
      %vm1049 = vweird.f32 %v1043
      %vm1050 = vmor %vm1048, %vm1049
      %v1051 = vsel %vm1050, %v1043, %v1047
      %v1052 = vand.u32 2147483647, %v1021
      %vm1053 = vcmp.eq.f32.partialorder %v1052, 8.507059e+37
      %v1054 = vand.u32 %v1021, 2147483648
      %v1055 = vor.u32 1.1754944e-38, %v1054
      %v1056 = vsel %vm1053, %v1055, %v1051
      %v1057 = vmul.f32 1.0, %v1056
      %v1058 = vrcp.pop %v1022
      %v1059 = vmul.f32 %v1022, %v1058
      %v1060 = vsub.f32 1.0, %v1059
      %v1061 = vmul.f32 %v1058, %v1060
      %v1062 = vadd.f32 %v1058, %v1061
      %vm1063 = vweird.f32 %v1022
      %vm1064 = vweird.f32 %v1058
      %vm1065 = vmor %vm1063, %vm1064
      %v1066 = vsel %vm1065, %v1058, %v1062
      %v1067 = vand.u32 2147483647, %v1022
      %vm1068 = vcmp.eq.f32.partialorder %v1067, 8.507059e+37
      %v1069 = vand.u32 %v1022, 2147483648
      %v1070 = vor.u32 1.1754944e-38, %v1069
      %v1071 = vsel %vm1068, %v1070, %v1066
      %v1072 = vmul.f32 1.0, %v1071
      %v1073 = vrcp.pop %v1023
      %v1074 = vmul.f32 %v1023, %v1073
      %v1075 = vsub.f32 1.0, %v1074
      %v1076 = vmul.f32 %v1073, %v1075
      %v1077 = vadd.f32 %v1073, %v1076
      %vm1078 = vweird.f32 %v1023
      %vm1079 = vweird.f32 %v1073
      %vm1080 = vmor %vm1078, %vm1079
      %v1081 = vsel %vm1080, %v1073, %v1077
      %v1082 = vand.u32 2147483647, %v1023
      %vm1083 = vcmp.eq.f32.partialorder %v1082, 8.507059e+37
      %v1084 = vand.u32 %v1023, 2147483648
      %v1085 = vor.u32 1.1754944e-38, %v1084
      %v1086 = vsel %vm1083, %v1085, %v1081
      %v1087 = vmul.f32 1.0, %v1086
      %v1088 = vrcp.pop %v1024
      %v1089 = vmul.f32 %v1024, %v1088
      %v1090 = vsub.f32 1.0, %v1089
      %v1091 = vmul.f32 %v1088, %v1090
      %v1092 = vadd.f32 %v1088, %v1091
      %vm1093 = vweird.f32 %v1024
      %vm1094 = vweird.f32 %v1088
      %vm1095 = vmor %vm1093, %vm1094
      %v1096 = vsel %vm1095, %v1088, %v1092
      %v1097 = vand.u32 2147483647, %v1024
      %vm1098 = vcmp.eq.f32.partialorder %v1097, 8.507059e+37
      %v1099 = vand.u32 %v1024, 2147483648
      %v1100 = vor.u32 1.1754944e-38, %v1099
      %v1101 = vsel %vm1098, %v1100, %v1096
      %v1102 = vmul.f32 1.0, %v1101
      %v1103 = vrcp.pop %v1025
      %v1104 = vmul.f32 %v1025, %v1103
      %v1105 = vsub.f32 1.0, %v1104
      %v1106 = vmul.f32 %v1103, %v1105
      %v1107 = vadd.f32 %v1103, %v1106
      %vm1108 = vweird.f32 %v1025
      %vm1109 = vweird.f32 %v1103
      %vm1110 = vmor %vm1108, %vm1109
      %v1111 = vsel %vm1110, %v1103, %v1107
      %v1112 = vand.u32 2147483647, %v1025
      %vm1113 = vcmp.eq.f32.partialorder %v1112, 8.507059e+37
      %v1114 = vand.u32 %v1025, 2147483648
      %v1115 = vor.u32 1.1754944e-38, %v1114
      %v1116 = vsel %vm1113, %v1115, %v1111
      %v1117 = vmul.f32 1.0, %v1116
      %v1118 = vrcp.pop %v1026
      %v1119 = vmul.f32 %v1026, %v1118
      %v1120 = vsub.f32 1.0, %v1119
      %v1121 = vmul.f32 %v1118, %v1120
      %v1122 = vadd.f32 %v1118, %v1121
      %vm1123 = vweird.f32 %v1026
      %vm1124 = vweird.f32 %v1118
      %vm1125 = vmor %vm1123, %vm1124
      %v1126 = vsel %vm1125, %v1118, %v1122
      %v1127 = vand.u32 2147483647, %v1026
      %vm1128 = vcmp.eq.f32.partialorder %v1127, 8.507059e+37
      %v1129 = vand.u32 %v1026, 2147483648
      %v1130 = vor.u32 1.1754944e-38, %v1129
      %v1131 = vsel %vm1128, %v1130, %v1126
      %v1132 = vmul.f32 1.0, %v1131
      %v1133 = vrcp.pop %v1027
      %v1134 = vmul.f32 %v1027, %v1133
      %v1135 = vsub.f32 1.0, %v1134
      %v1136 = vmul.f32 %v1133, %v1135
      %v1137 = vadd.f32 %v1133, %v1136
      %vm1138 = vweird.f32 %v1027
      %vm1139 = vweird.f32 %v1133
      %vm1140 = vmor %vm1138, %vm1139
      %v1141 = vsel %vm1140, %v1133, %v1137
      %v1142 = vand.u32 2147483647, %v1027
      %vm1143 = vcmp.eq.f32.partialorder %v1142, 8.507059e+37
      %v1144 = vand.u32 %v1027, 2147483648
      %v1145 = vor.u32 1.1754944e-38, %v1144
      %v1146 = vsel %vm1143, %v1145, %v1141
      %v1147 = vmul.f32 1.0, %v1146
      %v1148 = vmul.f32 %v977, %v1042
      %v1149 = vmul.f32 %v979, %v1057
      %v1150 = vmul.f32 %v982, %v1072
      %v1151 = vmul.f32 %v984, %v1087
      %v1152 = vmul.f32 %v987, %v1102
      %v1153 = vmul.f32 %v989, %v1117
      %v1154 = vmul.f32 %v992, %v1132
      %v1155 = vmul.f32 %v994, %v1147
      %v1156 = vpack.c.bf16 %v1149, %v1148
      %v1157 = vpack.c.bf16 %v1151, %v1150
      %v1158 = vpack.c.bf16 %v1153, %v1152
      %v1159 = vpack.c.bf16 %v1155, %v1154
      %s1160 = scalar_lea.vmem %s1, 192
      %v1161 = vld [vmem:[%s1160] sm:$0xf]
      %v1162 = vld [vmem:[%s1160 + $0x4] sm:$0xf]
      %v1163 = vld [vmem:[%s1160 + $0x8] sm:$0xf]
      %v1164 = vld [vmem:[%s1160 + $0xc] sm:$0xf]
      %v1165 = vld [vmem:[%s1160 + $0x10] sm:$0xf]
      %v1166 = vld [vmem:[%s1160 + $0x14] sm:$0xf]
      %v1167 = vld [vmem:[%s1160 + $0x18] sm:$0xf]
      %v1168 = vld [vmem:[%s1160 + $0x1c] sm:$0xf]
      %v1169 = vld [vmem:[%s1160 + $0x20] sm:$0xf]
      %v1170 = vld [vmem:[%s1160 + $0x24] sm:$0xf]
      %v1171 = vld [vmem:[%s1160 + $0x28] sm:$0xf]
      %v1172 = vld [vmem:[%s1160 + $0x2c] sm:$0xf]
      %v1173 = vld [vmem:[%s1160 + $0x30] sm:$0xf]
      %v1174 = vld [vmem:[%s1160 + $0x34] sm:$0xf]
      %v1175 = vld [vmem:[%s1160 + $0x38] sm:$0xf]
      %v1176 = vld [vmem:[%s1160 + $0x3c] sm:$0xf]
      %s1177 = scalar_lea.vmem %s2, 3
      %v1178 = vld [vmem:[%s1177] sm:$0x1]
      %v1180 = vperm.slane %v1178, 0
      %v1198 = vunpack.c.l.b16 %v1161
      %v1199 = vunpack.c.l.b16 %v1162
      %v1200 = vunpack.c.l.b16 %v1163
      %v1201 = vunpack.c.l.b16 %v1164
      %v1202 = vunpack.c.l.b16 %v1165
      %v1203 = vunpack.c.l.b16 %v1166
      %v1204 = vunpack.c.l.b16 %v1167
      %v1205 = vunpack.c.l.b16 %v1168
      %v1206 = vunpack.c.l.b16 %v1169
      %v1207 = vunpack.c.l.b16 %v1170
      %v1208 = vunpack.c.l.b16 %v1171
      %v1209 = vunpack.c.l.b16 %v1172
      %v1210 = vunpack.c.l.b16 %v1173
      %v1211 = vunpack.c.l.b16 %v1174
      %v1212 = vunpack.c.l.b16 %v1175
      %v1213 = vunpack.c.l.b16 %v1176
      %v1214 = vpack.c.b16 %v1199, %v1198
      %v1215 = vpack.c.b16 %v1201, %v1200
      %v1216 = vpack.c.b16 %v1203, %v1202
      %v1217 = vpack.c.b16 %v1205, %v1204
      %v1218 = vpack.c.b16 %v1207, %v1206
      %v1219 = vpack.c.b16 %v1209, %v1208
      %v1220 = vpack.c.b16 %v1211, %v1210
      %v1221 = vpack.c.b16 %v1213, %v1212
      %1230 = vmatpush.bf16.msra.mxu0 %v1221
      %1231 = vmatpush.bf16.msra.mxu0 %v1220
      %1232 = vmatpush.bf16.msra.mxu0 %v1219
      %1233 = vmatpush.bf16.msra.mxu0 %v1218
      %1234 = vmatpush.bf16.msra.mxu0 %v1217
      %1235 = vmatpush.bf16.msra.mxu0 %v1216
      %1236 = vmatpush.bf16.msra.mxu0 %v1215
      %1237 = vmatpush.bf16.msra.mxu0 %v1214
      %1238 = vmatmul.bf16.gmra.mxu0 %v1156
      %v1239 = vpop.f32.mrf.mxu0
      %v1240 = vadd.f32 %v1180, %v1239
      %v1241 = vpop.f32.mrf.mxu0
      %v1242 = vadd.f32 %v1180, %v1241
      %1243 = vmatmul.bf16.gmra.mxu0 %v1157
      %v1244 = vpop.f32.mrf.mxu0
      %v1245 = vadd.f32 %v1180, %v1244
      %v1246 = vpop.f32.mrf.mxu0
      %v1247 = vadd.f32 %v1180, %v1246
      %1248 = vmatmul.bf16.gmra.mxu0 %v1158
      %v1249 = vpop.f32.mrf.mxu0
      %v1250 = vadd.f32 %v1180, %v1249
      %v1251 = vpop.f32.mrf.mxu0
      %v1252 = vadd.f32 %v1180, %v1251
      %1253 = vmatmul.bf16.gmra.mxu0 %v1159
      %v1254 = vpop.f32.mrf.mxu0
      %v1255 = vadd.f32 %v1180, %v1254
      %v1256 = vpop.f32.mrf.mxu0
      %v1257 = vadd.f32 %v1180, %v1256
      %1258 = vdwg.mxu0
      %v1259 = vxor.u32 %v1240, 2147483648
      %v1260 = vxor.u32 %v1242, 2147483648
      %v1261 = vxor.u32 %v1245, 2147483648
      %v1262 = vxor.u32 %v1247, 2147483648
      %v1263 = vxor.u32 %v1250, 2147483648
      %v1264 = vxor.u32 %v1252, 2147483648
      %v1265 = vxor.u32 %v1255, 2147483648
      %v1266 = vxor.u32 %v1257, 2147483648
      %v1267 = vmul.f32 %v1259, 1.442695
      %v1268 = vpow.pop %v1267
      %v1269 = vmul.f32 %v1260, 1.442695
      %v1270 = vpow.pop %v1269
      %v1271 = vmul.f32 %v1261, 1.442695
      %v1272 = vpow.pop %v1271
      %v1273 = vmul.f32 %v1262, 1.442695
      %v1274 = vpow.pop %v1273
      %v1275 = vmul.f32 %v1263, 1.442695
      %v1276 = vpow.pop %v1275
      %v1277 = vmul.f32 %v1264, 1.442695
      %v1278 = vpow.pop %v1277
      %v1279 = vmul.f32 %v1265, 1.442695
      %v1280 = vpow.pop %v1279
      %v1281 = vmul.f32 %v1266, 1.442695
      %v1282 = vpow.pop %v1281
      %v1283 = vadd.f32 %v1268, 1.0
      %v1284 = vadd.f32 %v1270, 1.0
      %v1285 = vadd.f32 %v1272, 1.0
      %v1286 = vadd.f32 %v1274, 1.0
      %v1287 = vadd.f32 %v1276, 1.0
      %v1288 = vadd.f32 %v1278, 1.0
      %v1289 = vadd.f32 %v1280, 1.0
      %v1290 = vadd.f32 %v1282, 1.0
      %v1291 = vrcp.pop %v1283
      %v1292 = vmul.f32 %v1283, %v1291
      %v1293 = vsub.f32 1.0, %v1292
      %v1294 = vmul.f32 %v1291, %v1293
      %v1295 = vadd.f32 %v1291, %v1294
      %vm1296 = vweird.f32 %v1283
      %vm1297 = vweird.f32 %v1291
      %vm1298 = vmor %vm1296, %vm1297
      %v1299 = vsel %vm1298, %v1291, %v1295
      %v1300 = vand.u32 2147483647, %v1283
      %vm1301 = vcmp.eq.f32.partialorder %v1300, 8.507059e+37
      %v1302 = vand.u32 %v1283, 2147483648
      %v1303 = vor.u32 1.1754944e-38, %v1302
      %v1304 = vsel %vm1301, %v1303, %v1299
      %v1305 = vmul.f32 1.0, %v1304
      %v1306 = vrcp.pop %v1284
      %v1307 = vmul.f32 %v1284, %v1306
      %v1308 = vsub.f32 1.0, %v1307
      %v1309 = vmul.f32 %v1306, %v1308
      %v1310 = vadd.f32 %v1306, %v1309
      %vm1311 = vweird.f32 %v1284
      %vm1312 = vweird.f32 %v1306
      %vm1313 = vmor %vm1311, %vm1312
      %v1314 = vsel %vm1313, %v1306, %v1310
      %v1315 = vand.u32 2147483647, %v1284
      %vm1316 = vcmp.eq.f32.partialorder %v1315, 8.507059e+37
      %v1317 = vand.u32 %v1284, 2147483648
      %v1318 = vor.u32 1.1754944e-38, %v1317
      %v1319 = vsel %vm1316, %v1318, %v1314
      %v1320 = vmul.f32 1.0, %v1319
      %v1321 = vrcp.pop %v1285
      %v1322 = vmul.f32 %v1285, %v1321
      %v1323 = vsub.f32 1.0, %v1322
      %v1324 = vmul.f32 %v1321, %v1323
      %v1325 = vadd.f32 %v1321, %v1324
      %vm1326 = vweird.f32 %v1285
      %vm1327 = vweird.f32 %v1321
      %vm1328 = vmor %vm1326, %vm1327
      %v1329 = vsel %vm1328, %v1321, %v1325
      %v1330 = vand.u32 2147483647, %v1285
      %vm1331 = vcmp.eq.f32.partialorder %v1330, 8.507059e+37
      %v1332 = vand.u32 %v1285, 2147483648
      %v1333 = vor.u32 1.1754944e-38, %v1332
      %v1334 = vsel %vm1331, %v1333, %v1329
      %v1335 = vmul.f32 1.0, %v1334
      %v1336 = vrcp.pop %v1286
      %v1337 = vmul.f32 %v1286, %v1336
      %v1338 = vsub.f32 1.0, %v1337
      %v1339 = vmul.f32 %v1336, %v1338
      %v1340 = vadd.f32 %v1336, %v1339
      %vm1341 = vweird.f32 %v1286
      %vm1342 = vweird.f32 %v1336
      %vm1343 = vmor %vm1341, %vm1342
      %v1344 = vsel %vm1343, %v1336, %v1340
      %v1345 = vand.u32 2147483647, %v1286
      %vm1346 = vcmp.eq.f32.partialorder %v1345, 8.507059e+37
      %v1347 = vand.u32 %v1286, 2147483648
      %v1348 = vor.u32 1.1754944e-38, %v1347
      %v1349 = vsel %vm1346, %v1348, %v1344
      %v1350 = vmul.f32 1.0, %v1349
      %v1351 = vrcp.pop %v1287
      %v1352 = vmul.f32 %v1287, %v1351
      %v1353 = vsub.f32 1.0, %v1352
      %v1354 = vmul.f32 %v1351, %v1353
      %v1355 = vadd.f32 %v1351, %v1354
      %vm1356 = vweird.f32 %v1287
      %vm1357 = vweird.f32 %v1351
      %vm1358 = vmor %vm1356, %vm1357
      %v1359 = vsel %vm1358, %v1351, %v1355
      %v1360 = vand.u32 2147483647, %v1287
      %vm1361 = vcmp.eq.f32.partialorder %v1360, 8.507059e+37
      %v1362 = vand.u32 %v1287, 2147483648
      %v1363 = vor.u32 1.1754944e-38, %v1362
      %v1364 = vsel %vm1361, %v1363, %v1359
      %v1365 = vmul.f32 1.0, %v1364
      %v1366 = vrcp.pop %v1288
      %v1367 = vmul.f32 %v1288, %v1366
      %v1368 = vsub.f32 1.0, %v1367
      %v1369 = vmul.f32 %v1366, %v1368
      %v1370 = vadd.f32 %v1366, %v1369
      %vm1371 = vweird.f32 %v1288
      %vm1372 = vweird.f32 %v1366
      %vm1373 = vmor %vm1371, %vm1372
      %v1374 = vsel %vm1373, %v1366, %v1370
      %v1375 = vand.u32 2147483647, %v1288
      %vm1376 = vcmp.eq.f32.partialorder %v1375, 8.507059e+37
      %v1377 = vand.u32 %v1288, 2147483648
      %v1378 = vor.u32 1.1754944e-38, %v1377
      %v1379 = vsel %vm1376, %v1378, %v1374
      %v1380 = vmul.f32 1.0, %v1379
      %v1381 = vrcp.pop %v1289
      %v1382 = vmul.f32 %v1289, %v1381
      %v1383 = vsub.f32 1.0, %v1382
      %v1384 = vmul.f32 %v1381, %v1383
      %v1385 = vadd.f32 %v1381, %v1384
      %vm1386 = vweird.f32 %v1289
      %vm1387 = vweird.f32 %v1381
      %vm1388 = vmor %vm1386, %vm1387
      %v1389 = vsel %vm1388, %v1381, %v1385
      %v1390 = vand.u32 2147483647, %v1289
      %vm1391 = vcmp.eq.f32.partialorder %v1390, 8.507059e+37
      %v1392 = vand.u32 %v1289, 2147483648
      %v1393 = vor.u32 1.1754944e-38, %v1392
      %v1394 = vsel %vm1391, %v1393, %v1389
      %v1395 = vmul.f32 1.0, %v1394
      %v1396 = vrcp.pop %v1290
      %v1397 = vmul.f32 %v1290, %v1396
      %v1398 = vsub.f32 1.0, %v1397
      %v1399 = vmul.f32 %v1396, %v1398
      %v1400 = vadd.f32 %v1396, %v1399
      %vm1401 = vweird.f32 %v1290
      %vm1402 = vweird.f32 %v1396
      %vm1403 = vmor %vm1401, %vm1402
      %v1404 = vsel %vm1403, %v1396, %v1400
      %v1405 = vand.u32 2147483647, %v1290
      %vm1406 = vcmp.eq.f32.partialorder %v1405, 8.507059e+37
      %v1407 = vand.u32 %v1290, 2147483648
      %v1408 = vor.u32 1.1754944e-38, %v1407
      %v1409 = vsel %vm1406, %v1408, %v1404
      %v1410 = vmul.f32 1.0, %v1409
      %v1411 = vmul.f32 %v1240, %v1305
      %v1412 = vmul.f32 %v1242, %v1320
      %v1413 = vmul.f32 %v1245, %v1335
      %v1414 = vmul.f32 %v1247, %v1350
      %v1415 = vmul.f32 %v1250, %v1365
      %v1416 = vmul.f32 %v1252, %v1380
      %v1417 = vmul.f32 %v1255, %v1395
      %v1418 = vmul.f32 %v1257, %v1410
      %v1419 = vpack.c.bf16 %v1411, %v1411
      %v1420 = vpack.c.bf16 %v1412, %v1412
      %v1421 = vpack.c.bf16 %v1413, %v1413
      %v1422 = vpack.c.bf16 %v1414, %v1414
      %v1423 = vpack.c.bf16 %v1415, %v1415
      %v1424 = vpack.c.bf16 %v1416, %v1416
      %v1425 = vpack.c.bf16 %v1417, %v1417
      %v1426 = vpack.c.bf16 %v1418, %v1418
      %1427 = vst [vmem:[%s311] sm:$0xf] %v1419
      %1428 = vst [vmem:[%s311 + $0x4] sm:$0xf] %v1420
      %1429 = vst [vmem:[%s311 + $0x8] sm:$0xf] %v1421
      %1430 = vst [vmem:[%s311 + $0xc] sm:$0xf] %v1422
      %1431 = vst [vmem:[%s311 + $0x10] sm:$0xf] %v1423
      %1432 = vst [vmem:[%s311 + $0x14] sm:$0xf] %v1424
      %1433 = vst [vmem:[%s311 + $0x18] sm:$0xf] %v1425
      %1434 = vst [vmem:[%s311 + $0x1c] sm:$0xf] %v1426
      %1435 = vst [vmem:[#allocation2] sm:$0xff] %v1148
      %1436 = vst [vmem:[#allocation2 + $0x8] sm:$0xff] %v1149
      %1437 = vst [vmem:[#allocation2 + $0x10] sm:$0xff] %v1150
      %1438 = vst [vmem:[#allocation2 + $0x18] sm:$0xff] %v1151
      %1439 = vst [vmem:[#allocation2 + $0x20] sm:$0xff] %v1152
      %1440 = vst [vmem:[#allocation2 + $0x28] sm:$0xff] %v1153
      %1441 = vst [vmem:[#allocation2 + $0x30] sm:$0xff] %v1154
      %1442 = vst [vmem:[#allocation2 + $0x38] sm:$0xff] %v1155
      %v1443 = vld [vmem:[#allocation2] ss:$2 sm:$0xf]
      %1444 = vst [vmem:[#allocation3] sm:$0xf] %v1443
      %s1445 = scalar_lea.vmem [#allocation2], 16
      %v1446 = vld [vmem:[%s1445] ss:$2 sm:$0xf]
      %1447 = vst [vmem:[#allocation3 + $0x4] sm:$0xf] %v1446
      %s1448 = scalar_lea.vmem [#allocation2], 32
      %v1449 = vld [vmem:[%s1448] ss:$2 sm:$0xf]
      %1450 = vst [vmem:[#allocation3 + $0x8] sm:$0xf] %v1449
      %s1451 = scalar_lea.vmem [#allocation2], 48
      %v1452 = vld [vmem:[%s1451] ss:$2 sm:$0xf]
      %1453 = vst [vmem:[#allocation3 + $0xc] sm:$0xf] %v1452
      %v1454 = vld [vmem:[#allocation3] sm:$0xff]
      %v1455 = vld [vmem:[#allocation3 + $0x8] sm:$0xff]
      %v1456 = vpack.c.bf16 %v1455, %v1454
      %s1457 = scalar_lea.vmem %s1, 256
      %v1458 = vld [vmem:[%s1457] sm:$0xf]
      %v1459 = vld [vmem:[%s1457 + $0x4] sm:$0xf]
      %v1460 = vld [vmem:[%s1457 + $0x8] sm:$0xf]
      %v1461 = vld [vmem:[%s1457 + $0xc] sm:$0xf]
      %v1462 = vld [vmem:[%s1457 + $0x10] sm:$0xf]
      %v1463 = vld [vmem:[%s1457 + $0x14] sm:$0xf]
      %v1464 = vld [vmem:[%s1457 + $0x18] sm:$0xf]
      %v1465 = vld [vmem:[%s1457 + $0x1c] sm:$0xf]
      %v1466 = vld [vmem:[%s1457 + $0x20] sm:$0xf]
      %v1467 = vld [vmem:[%s1457 + $0x24] sm:$0xf]
      %v1468 = vld [vmem:[%s1457 + $0x28] sm:$0xf]
      %v1469 = vld [vmem:[%s1457 + $0x2c] sm:$0xf]
      %v1470 = vld [vmem:[%s1457 + $0x30] sm:$0xf]
      %v1471 = vld [vmem:[%s1457 + $0x34] sm:$0xf]
      %v1472 = vld [vmem:[%s1457 + $0x38] sm:$0xf]
      %v1473 = vld [vmem:[%s1457 + $0x3c] sm:$0xf]
      %s1474 = scalar_lea.vmem %s2, 4
      %v1475 = vld [vmem:[%s1474] sm:$0x1]
      %v1477 = vperm.slane %v1475, 0
      %v1495 = vunpack.c.l.b16 %v1458
      %v1496 = vunpack.c.l.b16 %v1459
      %v1497 = vunpack.c.l.b16 %v1460
      %v1498 = vunpack.c.l.b16 %v1461
      %v1499 = vunpack.c.l.b16 %v1462
      %v1500 = vunpack.c.l.b16 %v1463
      %v1501 = vunpack.c.l.b16 %v1464
      %v1502 = vunpack.c.l.b16 %v1465
      %v1503 = vunpack.c.l.b16 %v1466
      %v1504 = vunpack.c.l.b16 %v1467
      %v1505 = vunpack.c.l.b16 %v1468
      %v1506 = vunpack.c.l.b16 %v1469
      %v1507 = vunpack.c.l.b16 %v1470
      %v1508 = vunpack.c.l.b16 %v1471
      %v1509 = vunpack.c.l.b16 %v1472
      %v1510 = vunpack.c.l.b16 %v1473
      %v1511 = vpack.c.b16 %v1496, %v1495
      %v1512 = vpack.c.b16 %v1498, %v1497
      %v1513 = vpack.c.b16 %v1500, %v1499
      %v1514 = vpack.c.b16 %v1502, %v1501
      %v1515 = vpack.c.b16 %v1504, %v1503
      %v1516 = vpack.c.b16 %v1506, %v1505
      %v1517 = vpack.c.b16 %v1508, %v1507
      %v1518 = vpack.c.b16 %v1510, %v1509
      %1527 = vmatpush.bf16.msra.mxu0 %v1518
      %1528 = vmatpush.bf16.msra.mxu0 %v1517
      %1529 = vmatpush.bf16.msra.mxu0 %v1516
      %1530 = vmatpush.bf16.msra.mxu0 %v1515
      %1531 = vmatpush.bf16.msra.mxu0 %v1514
      %1532 = vmatpush.bf16.msra.mxu0 %v1513
      %1533 = vmatpush.bf16.msra.mxu0 %v1512
      %1534 = vmatpush.bf16.msra.mxu0 %v1511
      %1535 = vmatmul.bf16.gmra.mxu0 %v1456
      %v1536 = vpop.f32.mrf.mxu0
      %v1537 = vadd.f32 %v1477, %v1536
      %v1538 = vpop.f32.mrf.mxu0
      %v1539 = vadd.f32 %v1477, %v1538
      %1540 = vdwg.mxu0
      %v1541 = vxor.u32 %v1537, 2147483648
      %v1542 = vxor.u32 %v1539, 2147483648
      %v1543 = vmul.f32 %v1541, 1.442695
      %v1544 = vpow.pop %v1543
      %v1545 = vmul.f32 %v1542, 1.442695
      %v1546 = vpow.pop %v1545
      %v1547 = vadd.f32 %v1544, 1.0
      %v1548 = vadd.f32 %v1546, 1.0
      %v1549 = vrcp.pop %v1547
      %v1550 = vmul.f32 %v1547, %v1549
      %v1551 = vsub.f32 1.0, %v1550
      %v1552 = vmul.f32 %v1549, %v1551
      %v1553 = vadd.f32 %v1549, %v1552
      %vm1554 = vweird.f32 %v1547
      %vm1555 = vweird.f32 %v1549
      %vm1556 = vmor %vm1554, %vm1555
      %v1557 = vsel %vm1556, %v1549, %v1553
      %v1558 = vand.u32 2147483647, %v1547
      %vm1559 = vcmp.eq.f32.partialorder %v1558, 8.507059e+37
      %v1560 = vand.u32 %v1547, 2147483648
      %v1561 = vor.u32 1.1754944e-38, %v1560
      %v1562 = vsel %vm1559, %v1561, %v1557
      %v1563 = vmul.f32 1.0, %v1562
      %v1564 = vrcp.pop %v1548
      %v1565 = vmul.f32 %v1548, %v1564
      %v1566 = vsub.f32 1.0, %v1565
      %v1567 = vmul.f32 %v1564, %v1566
      %v1568 = vadd.f32 %v1564, %v1567
      %vm1569 = vweird.f32 %v1548
      %vm1570 = vweird.f32 %v1564
      %vm1571 = vmor %vm1569, %vm1570
      %v1572 = vsel %vm1571, %v1564, %v1568
      %v1573 = vand.u32 2147483647, %v1548
      %vm1574 = vcmp.eq.f32.partialorder %v1573, 8.507059e+37
      %v1575 = vand.u32 %v1548, 2147483648
      %v1576 = vor.u32 1.1754944e-38, %v1575
      %v1577 = vsel %vm1574, %v1576, %v1572
      %v1578 = vmul.f32 1.0, %v1577
      %v1579 = vmul.f32 %v1537, %v1563
      %v1580 = vmul.f32 %v1539, %v1578
      %v1581 = vpack.c.bf16 %v1580, %v1579
      %s1582 = scalar_lea.vmem %s1, 320
      %v1583 = vld [vmem:[%s1582] sm:$0xf]
      %v1584 = vld [vmem:[%s1582 + $0x4] sm:$0xf]
      %v1585 = vld [vmem:[%s1582 + $0x8] sm:$0xf]
      %v1586 = vld [vmem:[%s1582 + $0xc] sm:$0xf]
      %v1587 = vld [vmem:[%s1582 + $0x10] sm:$0xf]
      %v1588 = vld [vmem:[%s1582 + $0x14] sm:$0xf]
      %v1589 = vld [vmem:[%s1582 + $0x18] sm:$0xf]
      %v1590 = vld [vmem:[%s1582 + $0x1c] sm:$0xf]
      %v1591 = vld [vmem:[%s1582 + $0x20] sm:$0xf]
      %v1592 = vld [vmem:[%s1582 + $0x24] sm:$0xf]
      %v1593 = vld [vmem:[%s1582 + $0x28] sm:$0xf]
      %v1594 = vld [vmem:[%s1582 + $0x2c] sm:$0xf]
      %v1595 = vld [vmem:[%s1582 + $0x30] sm:$0xf]
      %v1596 = vld [vmem:[%s1582 + $0x34] sm:$0xf]
      %v1597 = vld [vmem:[%s1582 + $0x38] sm:$0xf]
      %v1598 = vld [vmem:[%s1582 + $0x3c] sm:$0xf]
      %s1599 = scalar_lea.vmem %s2, 5
      %v1600 = vld [vmem:[%s1599] sm:$0x1]
      %v1602 = vperm.slane %v1600, 0
      %v1620 = vunpack.c.l.b16 %v1583
      %v1621 = vunpack.c.l.b16 %v1584
      %v1622 = vunpack.c.l.b16 %v1585
      %v1623 = vunpack.c.l.b16 %v1586
      %v1624 = vunpack.c.l.b16 %v1587
      %v1625 = vunpack.c.l.b16 %v1588
      %v1626 = vunpack.c.l.b16 %v1589
      %v1627 = vunpack.c.l.b16 %v1590
      %v1628 = vunpack.c.l.b16 %v1591
      %v1629 = vunpack.c.l.b16 %v1592
      %v1630 = vunpack.c.l.b16 %v1593
      %v1631 = vunpack.c.l.b16 %v1594
      %v1632 = vunpack.c.l.b16 %v1595
      %v1633 = vunpack.c.l.b16 %v1596
      %v1634 = vunpack.c.l.b16 %v1597
      %v1635 = vunpack.c.l.b16 %v1598
      %v1636 = vpack.c.b16 %v1621, %v1620
      %v1637 = vpack.c.b16 %v1623, %v1622
      %v1638 = vpack.c.b16 %v1625, %v1624
      %v1639 = vpack.c.b16 %v1627, %v1626
      %v1640 = vpack.c.b16 %v1629, %v1628
      %v1641 = vpack.c.b16 %v1631, %v1630
      %v1642 = vpack.c.b16 %v1633, %v1632
      %v1643 = vpack.c.b16 %v1635, %v1634
      %1652 = vmatpush.bf16.msra.mxu0 %v1643
      %1653 = vmatpush.bf16.msra.mxu0 %v1642
      %1654 = vmatpush.bf16.msra.mxu0 %v1641
      %1655 = vmatpush.bf16.msra.mxu0 %v1640
      %1656 = vmatpush.bf16.msra.mxu0 %v1639
      %1657 = vmatpush.bf16.msra.mxu0 %v1638
      %1658 = vmatpush.bf16.msra.mxu0 %v1637
      %1659 = vmatpush.bf16.msra.mxu0 %v1636
      %1660 = vmatmul.bf16.gmra.mxu0 %v1581
      %v1661 = vpop.f32.mrf.mxu0
      %v1662 = vadd.f32 %v1602, %v1661
      %v1663 = vpop.f32.mrf.mxu0
      %v1664 = vadd.f32 %v1602, %v1663
      %1665 = vdwg.mxu0
      %v1666 = vxor.u32 %v1662, 2147483648
      %v1667 = vxor.u32 %v1664, 2147483648
      %v1668 = vmul.f32 %v1666, 1.442695
      %v1669 = vpow.pop %v1668
      %v1670 = vmul.f32 %v1667, 1.442695
      %v1671 = vpow.pop %v1670
      %v1672 = vadd.f32 %v1669, 1.0
      %v1673 = vadd.f32 %v1671, 1.0
      %v1674 = vrcp.pop %v1672
      %v1675 = vmul.f32 %v1672, %v1674
      %v1676 = vsub.f32 1.0, %v1675
      %v1677 = vmul.f32 %v1674, %v1676
      %v1678 = vadd.f32 %v1674, %v1677
      %vm1679 = vweird.f32 %v1672
      %vm1680 = vweird.f32 %v1674
      %vm1681 = vmor %vm1679, %vm1680
      %v1682 = vsel %vm1681, %v1674, %v1678
      %v1683 = vand.u32 2147483647, %v1672
      %vm1684 = vcmp.eq.f32.partialorder %v1683, 8.507059e+37
      %v1685 = vand.u32 %v1672, 2147483648
      %v1686 = vor.u32 1.1754944e-38, %v1685
      %v1687 = vsel %vm1684, %v1686, %v1682
      %v1688 = vmul.f32 1.0, %v1687
      %v1689 = vrcp.pop %v1673
      %v1690 = vmul.f32 %v1673, %v1689
      %v1691 = vsub.f32 1.0, %v1690
      %v1692 = vmul.f32 %v1689, %v1691
      %v1693 = vadd.f32 %v1689, %v1692
      %vm1694 = vweird.f32 %v1673
      %vm1695 = vweird.f32 %v1689
      %vm1696 = vmor %vm1694, %vm1695
      %v1697 = vsel %vm1696, %v1689, %v1693
      %v1698 = vand.u32 2147483647, %v1673
      %vm1699 = vcmp.eq.f32.partialorder %v1698, 8.507059e+37
      %v1700 = vand.u32 %v1673, 2147483648
      %v1701 = vor.u32 1.1754944e-38, %v1700
      %v1702 = vsel %vm1699, %v1701, %v1697
      %v1703 = vmul.f32 1.0, %v1702
      %v1704 = vmul.f32 %v1662, %v1688
      %v1705 = vmul.f32 %v1664, %v1703
      %v1706 = vpack.c.bf16 %v1704, %v1704
      %v1707 = vpack.c.bf16 %v1705, %v1705
      %1708 = vst [vmem:[%s316] sm:$0xf] %v1706
      %1709 = vst [vmem:[%s316 + $0x4] sm:$0xf] %v1707
      %s1710 = scalar_lea.vmem %s1, 384
      %v1711 = vld [vmem:[%s1710] sm:$0xf]
      %v1712 = vld [vmem:[%s1710 + $0x4] sm:$0xf]
      %v1713 = vld [vmem:[%s1710 + $0x8] sm:$0xf]
      %v1714 = vld [vmem:[%s1710 + $0xc] sm:$0xf]
      %v1715 = vld [vmem:[%s1710 + $0x10] sm:$0xf]
      %v1716 = vld [vmem:[%s1710 + $0x14] sm:$0xf]
      %v1717 = vld [vmem:[%s1710 + $0x18] sm:$0xf]
      %v1718 = vld [vmem:[%s1710 + $0x1c] sm:$0xf]
      %v1719 = vld [vmem:[%s1710 + $0x20] sm:$0xf]
      %v1720 = vld [vmem:[%s1710 + $0x24] sm:$0xf]
      %v1721 = vld [vmem:[%s1710 + $0x28] sm:$0xf]
      %v1722 = vld [vmem:[%s1710 + $0x2c] sm:$0xf]
      %v1723 = vld [vmem:[%s1710 + $0x30] sm:$0xf]
      %v1724 = vld [vmem:[%s1710 + $0x34] sm:$0xf]
      %v1725 = vld [vmem:[%s1710 + $0x38] sm:$0xf]
      %v1726 = vld [vmem:[%s1710 + $0x3c] sm:$0xf]
      %s1727 = scalar_lea.vmem %s2, 6
      %v1728 = vld [vmem:[%s1727] sm:$0x1]
      %v1730 = vperm.slane %v1728, 0
      %v1748 = vunpack.c.l.b16 %v1711
      %v1749 = vunpack.c.l.b16 %v1712
      %v1750 = vunpack.c.l.b16 %v1713
      %v1751 = vunpack.c.l.b16 %v1714
      %v1752 = vunpack.c.l.b16 %v1715
      %v1753 = vunpack.c.l.b16 %v1716
      %v1754 = vunpack.c.l.b16 %v1717
      %v1755 = vunpack.c.l.b16 %v1718
      %v1756 = vunpack.c.l.b16 %v1719
      %v1757 = vunpack.c.l.b16 %v1720
      %v1758 = vunpack.c.l.b16 %v1721
      %v1759 = vunpack.c.l.b16 %v1722
      %v1760 = vunpack.c.l.b16 %v1723
      %v1761 = vunpack.c.l.b16 %v1724
      %v1762 = vunpack.c.l.b16 %v1725
      %v1763 = vunpack.c.l.b16 %v1726
      %v1764 = vpack.c.b16 %v1749, %v1748
      %v1765 = vpack.c.b16 %v1751, %v1750
      %v1766 = vpack.c.b16 %v1753, %v1752
      %v1767 = vpack.c.b16 %v1755, %v1754
      %v1768 = vpack.c.b16 %v1757, %v1756
      %v1769 = vpack.c.b16 %v1759, %v1758
      %v1770 = vpack.c.b16 %v1761, %v1760
      %v1771 = vpack.c.b16 %v1763, %v1762
      %1780 = vmatpush.bf16.msra.mxu0 %v1771
      %1781 = vmatpush.bf16.msra.mxu0 %v1770
      %1782 = vmatpush.bf16.msra.mxu0 %v1769
      %1783 = vmatpush.bf16.msra.mxu0 %v1768
      %1784 = vmatpush.bf16.msra.mxu0 %v1767
      %1785 = vmatpush.bf16.msra.mxu0 %v1766
      %1786 = vmatpush.bf16.msra.mxu0 %v1765
      %1787 = vmatpush.bf16.msra.mxu0 %v1764
      %1788 = vmatmul.bf16.gmra.mxu0 %v1581
      %v1789 = vpop.f32.mrf.mxu0
      %v1790 = vadd.f32 %v1730, %v1789
      %v1791 = vpop.f32.mrf.mxu0
      %v1792 = vadd.f32 %v1730, %v1791
      %1793 = vdwg.mxu0
      %v1794 = vxor.u32 %v1790, 2147483648
      %v1795 = vxor.u32 %v1792, 2147483648
      %v1796 = vmul.f32 %v1794, 1.442695
      %v1797 = vpow.pop %v1796
      %v1798 = vmul.f32 %v1795, 1.442695
      %v1799 = vpow.pop %v1798
      %v1800 = vadd.f32 %v1797, 1.0
      %v1801 = vadd.f32 %v1799, 1.0
      %v1802 = vrcp.pop %v1800
      %v1803 = vmul.f32 %v1800, %v1802
      %v1804 = vsub.f32 1.0, %v1803
      %v1805 = vmul.f32 %v1802, %v1804
      %v1806 = vadd.f32 %v1802, %v1805
      %vm1807 = vweird.f32 %v1800
      %vm1808 = vweird.f32 %v1802
      %vm1809 = vmor %vm1807, %vm1808
      %v1810 = vsel %vm1809, %v1802, %v1806
      %v1811 = vand.u32 2147483647, %v1800
      %vm1812 = vcmp.eq.f32.partialorder %v1811, 8.507059e+37
      %v1813 = vand.u32 %v1800, 2147483648
      %v1814 = vor.u32 1.1754944e-38, %v1813
      %v1815 = vsel %vm1812, %v1814, %v1810
      %v1816 = vmul.f32 1.0, %v1815
      %v1817 = vrcp.pop %v1801
      %v1818 = vmul.f32 %v1801, %v1817
      %v1819 = vsub.f32 1.0, %v1818
      %v1820 = vmul.f32 %v1817, %v1819
      %v1821 = vadd.f32 %v1817, %v1820
      %vm1822 = vweird.f32 %v1801
      %vm1823 = vweird.f32 %v1817
      %vm1824 = vmor %vm1822, %vm1823
      %v1825 = vsel %vm1824, %v1817, %v1821
      %v1826 = vand.u32 2147483647, %v1801
      %vm1827 = vcmp.eq.f32.partialorder %v1826, 8.507059e+37
      %v1828 = vand.u32 %v1801, 2147483648
      %v1829 = vor.u32 1.1754944e-38, %v1828
      %v1830 = vsel %vm1827, %v1829, %v1825
      %v1831 = vmul.f32 1.0, %v1830
      %v1832 = vmul.f32 %v1790, %v1816
      %v1833 = vmul.f32 %v1792, %v1831
      %v1834 = vpack.c.bf16 %v1833, %v1832
      %s1835 = scalar_lea.vmem %s1, 448
      %v1836 = vld [vmem:[%s1835] sm:$0xf]
      %v1837 = vld [vmem:[%s1835 + $0x4] sm:$0xf]
      %v1838 = vld [vmem:[%s1835 + $0x8] sm:$0xf]
      %v1839 = vld [vmem:[%s1835 + $0xc] sm:$0xf]
      %v1840 = vld [vmem:[%s1835 + $0x10] sm:$0xf]
      %v1841 = vld [vmem:[%s1835 + $0x14] sm:$0xf]
      %v1842 = vld [vmem:[%s1835 + $0x18] sm:$0xf]
      %v1843 = vld [vmem:[%s1835 + $0x1c] sm:$0xf]
      %v1844 = vld [vmem:[%s1835 + $0x20] sm:$0xf]
      %v1845 = vld [vmem:[%s1835 + $0x24] sm:$0xf]
      %v1846 = vld [vmem:[%s1835 + $0x28] sm:$0xf]
      %v1847 = vld [vmem:[%s1835 + $0x2c] sm:$0xf]
      %v1848 = vld [vmem:[%s1835 + $0x30] sm:$0xf]
      %v1849 = vld [vmem:[%s1835 + $0x34] sm:$0xf]
      %v1850 = vld [vmem:[%s1835 + $0x38] sm:$0xf]
      %v1851 = vld [vmem:[%s1835 + $0x3c] sm:$0xf]
      %s1852 = scalar_lea.vmem %s2, 7
      %v1853 = vld [vmem:[%s1852] sm:$0x1]
      %v1855 = vperm.slane %v1853, 0
      %v1873 = vunpack.c.l.b16 %v1836
      %v1874 = vunpack.c.l.b16 %v1837
      %v1875 = vunpack.c.l.b16 %v1838
      %v1876 = vunpack.c.l.b16 %v1839
      %v1877 = vunpack.c.l.b16 %v1840
      %v1878 = vunpack.c.l.b16 %v1841
      %v1879 = vunpack.c.l.b16 %v1842
      %v1880 = vunpack.c.l.b16 %v1843
      %v1881 = vunpack.c.l.b16 %v1844
      %v1882 = vunpack.c.l.b16 %v1845
      %v1883 = vunpack.c.l.b16 %v1846
      %v1884 = vunpack.c.l.b16 %v1847
      %v1885 = vunpack.c.l.b16 %v1848
      %v1886 = vunpack.c.l.b16 %v1849
      %v1887 = vunpack.c.l.b16 %v1850
      %v1888 = vunpack.c.l.b16 %v1851
      %v1889 = vpack.c.b16 %v1874, %v1873
      %v1890 = vpack.c.b16 %v1876, %v1875
      %v1891 = vpack.c.b16 %v1878, %v1877
      %v1892 = vpack.c.b16 %v1880, %v1879
      %v1893 = vpack.c.b16 %v1882, %v1881
      %v1894 = vpack.c.b16 %v1884, %v1883
      %v1895 = vpack.c.b16 %v1886, %v1885
      %v1896 = vpack.c.b16 %v1888, %v1887
      %1905 = vmatpush.bf16.msra.mxu0 %v1896
      %1906 = vmatpush.bf16.msra.mxu0 %v1895
      %1907 = vmatpush.bf16.msra.mxu0 %v1894
      %1908 = vmatpush.bf16.msra.mxu0 %v1893
      %1909 = vmatpush.bf16.msra.mxu0 %v1892
      %1910 = vmatpush.bf16.msra.mxu0 %v1891
      %1911 = vmatpush.bf16.msra.mxu0 %v1890
      %1912 = vmatpush.bf16.msra.mxu0 %v1889
      %1913 = vmatmul.bf16.gmra.mxu0 %v1834
      %v1914 = vpop.f32.mrf.mxu0
      %v1915 = vadd.f32 %v1855, %v1914
      %v1916 = vpop.f32.mrf.mxu0
      %v1917 = vadd.f32 %v1855, %v1916
      %1918 = vdwg.mxu0
      %v1919 = vxor.u32 %v1915, 2147483648
      %v1920 = vxor.u32 %v1917, 2147483648
      %v1921 = vmul.f32 %v1919, 1.442695
      %v1922 = vpow.pop %v1921
      %v1923 = vmul.f32 %v1920, 1.442695
      %v1924 = vpow.pop %v1923
      %v1925 = vadd.f32 %v1922, 1.0
      %v1926 = vadd.f32 %v1924, 1.0
      %v1927 = vrcp.pop %v1925
      %v1928 = vmul.f32 %v1925, %v1927
      %v1929 = vsub.f32 1.0, %v1928
      %v1930 = vmul.f32 %v1927, %v1929
      %v1931 = vadd.f32 %v1927, %v1930
      %vm1932 = vweird.f32 %v1925
      %vm1933 = vweird.f32 %v1927
      %vm1934 = vmor %vm1932, %vm1933
      %v1935 = vsel %vm1934, %v1927, %v1931
      %v1936 = vand.u32 2147483647, %v1925
      %vm1937 = vcmp.eq.f32.partialorder %v1936, 8.507059e+37
      %v1938 = vand.u32 %v1925, 2147483648
      %v1939 = vor.u32 1.1754944e-38, %v1938
      %v1940 = vsel %vm1937, %v1939, %v1935
      %v1941 = vmul.f32 1.0, %v1940
      %v1942 = vrcp.pop %v1926
      %v1943 = vmul.f32 %v1926, %v1942
      %v1944 = vsub.f32 1.0, %v1943
      %v1945 = vmul.f32 %v1942, %v1944
      %v1946 = vadd.f32 %v1942, %v1945
      %vm1947 = vweird.f32 %v1926
      %vm1948 = vweird.f32 %v1942
      %vm1949 = vmor %vm1947, %vm1948
      %v1950 = vsel %vm1949, %v1942, %v1946
      %v1951 = vand.u32 2147483647, %v1926
      %vm1952 = vcmp.eq.f32.partialorder %v1951, 8.507059e+37
      %v1953 = vand.u32 %v1926, 2147483648
      %v1954 = vor.u32 1.1754944e-38, %v1953
      %v1955 = vsel %vm1952, %v1954, %v1950
      %v1956 = vmul.f32 1.0, %v1955
      %v1957 = vmul.f32 %v1915, %v1941
      %v1958 = vmul.f32 %v1917, %v1956
      %v1959 = vpack.c.bf16 %v1957, %v1957
      %v1960 = vpack.c.bf16 %v1958, %v1958
      %1961 = vst [vmem:[%s321] sm:$0xf] %v1959
      %1962 = vst [vmem:[%s321 + $0x4] sm:$0xf] %v1960
      %1963 = vst [vmem:[#allocation2] sm:$0xff] %v1832
      %1964 = vst [vmem:[#allocation2 + $0x8] sm:$0xff] %v1833
      %v1965 = vld [vmem:[#allocation2] ss:$2 sm:$0x3]
      %1966 = vst [vmem:[#allocation3] sm:$0x3] %v1965
      %s1967 = scalar_lea.vmem [#allocation2], 8
      %v1968 = vld [vmem:[%s1967] ss:$2 sm:$0x3]
      %1969 = vst [vmem:[#allocation3 + $0x2] sm:$0x3] %v1968
      %v1970 = vld [vmem:[#allocation3] sm:$0xf]
      %v1971 = vpack.c.bf16 %v1970, %v1970
      %s1972 = scalar_lea.vmem %s1, 512
      %v1973 = vld [vmem:[%s1972] sm:$0xf]
      %v1974 = vld [vmem:[%s1972 + $0x4] sm:$0xf]
      %v1975 = vld [vmem:[%s1972 + $0x8] sm:$0xf]
      %v1976 = vld [vmem:[%s1972 + $0xc] sm:$0xf]
      %v1977 = vld [vmem:[%s1972 + $0x10] sm:$0xf]
      %v1978 = vld [vmem:[%s1972 + $0x14] sm:$0xf]
      %v1979 = vld [vmem:[%s1972 + $0x18] sm:$0xf]
      %v1980 = vld [vmem:[%s1972 + $0x1c] sm:$0xf]
      %v1981 = vld [vmem:[%s1972 + $0x20] sm:$0xf]
      %v1982 = vld [vmem:[%s1972 + $0x24] sm:$0xf]
      %v1983 = vld [vmem:[%s1972 + $0x28] sm:$0xf]
      %v1984 = vld [vmem:[%s1972 + $0x2c] sm:$0xf]
      %v1985 = vld [vmem:[%s1972 + $0x30] sm:$0xf]
      %v1986 = vld [vmem:[%s1972 + $0x34] sm:$0xf]
      %v1987 = vld [vmem:[%s1972 + $0x38] sm:$0xf]
      %v1988 = vld [vmem:[%s1972 + $0x3c] sm:$0xf]
      %s1989 = scalar_lea.vmem %s2, 8
      %v1990 = vld [vmem:[%s1989] sm:$0x1]
      %v1992 = vperm.slane %v1990, 0
      %v2010 = vunpack.c.l.b16 %v1973
      %v2011 = vunpack.c.l.b16 %v1974
      %v2012 = vunpack.c.l.b16 %v1975
      %v2013 = vunpack.c.l.b16 %v1976
      %v2014 = vunpack.c.l.b16 %v1977
      %v2015 = vunpack.c.l.b16 %v1978
      %v2016 = vunpack.c.l.b16 %v1979
      %v2017 = vunpack.c.l.b16 %v1980
      %v2018 = vunpack.c.l.b16 %v1981
      %v2019 = vunpack.c.l.b16 %v1982
      %v2020 = vunpack.c.l.b16 %v1983
      %v2021 = vunpack.c.l.b16 %v1984
      %v2022 = vunpack.c.l.b16 %v1985
      %v2023 = vunpack.c.l.b16 %v1986
      %v2024 = vunpack.c.l.b16 %v1987
      %v2025 = vunpack.c.l.b16 %v1988
      %v2026 = vpack.c.b16 %v2011, %v2010
      %v2027 = vpack.c.b16 %v2013, %v2012
      %v2028 = vpack.c.b16 %v2015, %v2014
      %v2029 = vpack.c.b16 %v2017, %v2016
      %v2030 = vpack.c.b16 %v2019, %v2018
      %v2031 = vpack.c.b16 %v2021, %v2020
      %v2032 = vpack.c.b16 %v2023, %v2022
      %v2033 = vpack.c.b16 %v2025, %v2024
      %2042 = vmatpush.bf16.msra.mxu0 %v2033
      %2043 = vmatpush.bf16.msra.mxu0 %v2032
      %2044 = vmatpush.bf16.msra.mxu0 %v2031
      %2045 = vmatpush.bf16.msra.mxu0 %v2030
      %2046 = vmatpush.bf16.msra.mxu0 %v2029
      %2047 = vmatpush.bf16.msra.mxu0 %v2028
      %2048 = vmatpush.bf16.msra.mxu0 %v2027
      %2049 = vmatpush.bf16.msra.mxu0 %v2026
      %2050 = vmatmul.bf16.gmra.mxu0 %v1971
      %v2051 = vpop.f32.mrf.mxu0
      %v2052 = vadd.f32 %v1992, %v2051
      %v2053 = vpop.f32.mrf.mxu0
      %2054 = vdwg.mxu0
      %v2055 = vxor.u32 %v2052, 2147483648
      %v2056 = vmul.f32 %v2055, 1.442695
      %v2057 = vpow.pop %v2056
      %v2058 = vadd.f32 %v2057, 1.0
      %v2059 = vrcp.pop %v2058
      %v2060 = vmul.f32 %v2058, %v2059
      %v2061 = vsub.f32 1.0, %v2060
      %v2062 = vmul.f32 %v2059, %v2061
      %v2063 = vadd.f32 %v2059, %v2062
      %vm2064 = vweird.f32 %v2058
      %vm2065 = vweird.f32 %v2059
      %vm2066 = vmor %vm2064, %vm2065
      %v2067 = vsel %vm2066, %v2059, %v2063
      %v2068 = vand.u32 2147483647, %v2058
      %vm2069 = vcmp.eq.f32.partialorder %v2068, 8.507059e+37
      %v2070 = vand.u32 %v2058, 2147483648
      %v2071 = vor.u32 1.1754944e-38, %v2070
      %v2072 = vsel %vm2069, %v2071, %v2067
      %v2073 = vmul.f32 1.0, %v2072
      %v2074 = vmul.f32 %v2052, %v2073
      %v2075 = vpack.c.bf16 %v2074, %v2074
      %s2076 = scalar_lea.vmem %s1, 576
      %v2077 = vld [vmem:[%s2076] sm:$0xf]
      %v2078 = vld [vmem:[%s2076 + $0x4] sm:$0xf]
      %v2079 = vld [vmem:[%s2076 + $0x8] sm:$0xf]
      %v2080 = vld [vmem:[%s2076 + $0xc] sm:$0xf]
      %v2081 = vld [vmem:[%s2076 + $0x10] sm:$0xf]
      %v2082 = vld [vmem:[%s2076 + $0x14] sm:$0xf]
      %v2083 = vld [vmem:[%s2076 + $0x18] sm:$0xf]
      %v2084 = vld [vmem:[%s2076 + $0x1c] sm:$0xf]
      %v2085 = vld [vmem:[%s2076 + $0x20] sm:$0xf]
      %v2086 = vld [vmem:[%s2076 + $0x24] sm:$0xf]
      %v2087 = vld [vmem:[%s2076 + $0x28] sm:$0xf]
      %v2088 = vld [vmem:[%s2076 + $0x2c] sm:$0xf]
      %v2089 = vld [vmem:[%s2076 + $0x30] sm:$0xf]
      %v2090 = vld [vmem:[%s2076 + $0x34] sm:$0xf]
      %v2091 = vld [vmem:[%s2076 + $0x38] sm:$0xf]
      %v2092 = vld [vmem:[%s2076 + $0x3c] sm:$0xf]
      %s2093 = scalar_lea.vmem %s2, 9
      %v2094 = vld [vmem:[%s2093] sm:$0x1]
      %v2096 = vperm.slane %v2094, 0
      %v2114 = vunpack.c.l.b16 %v2077
      %v2115 = vunpack.c.l.b16 %v2078
      %v2116 = vunpack.c.l.b16 %v2079
      %v2117 = vunpack.c.l.b16 %v2080
      %v2118 = vunpack.c.l.b16 %v2081
      %v2119 = vunpack.c.l.b16 %v2082
      %v2120 = vunpack.c.l.b16 %v2083
      %v2121 = vunpack.c.l.b16 %v2084
      %v2122 = vunpack.c.l.b16 %v2085
      %v2123 = vunpack.c.l.b16 %v2086
      %v2124 = vunpack.c.l.b16 %v2087
      %v2125 = vunpack.c.l.b16 %v2088
      %v2126 = vunpack.c.l.b16 %v2089
      %v2127 = vunpack.c.l.b16 %v2090
      %v2128 = vunpack.c.l.b16 %v2091
      %v2129 = vunpack.c.l.b16 %v2092
      %v2130 = vpack.c.b16 %v2115, %v2114
      %v2131 = vpack.c.b16 %v2117, %v2116
      %v2132 = vpack.c.b16 %v2119, %v2118
      %v2133 = vpack.c.b16 %v2121, %v2120
      %v2134 = vpack.c.b16 %v2123, %v2122
      %v2135 = vpack.c.b16 %v2125, %v2124
      %v2136 = vpack.c.b16 %v2127, %v2126
      %v2137 = vpack.c.b16 %v2129, %v2128
      %2146 = vmatpush.bf16.msra.mxu0 %v2137
      %2147 = vmatpush.bf16.msra.mxu0 %v2136
      %2148 = vmatpush.bf16.msra.mxu0 %v2135
      %2149 = vmatpush.bf16.msra.mxu0 %v2134
      %2150 = vmatpush.bf16.msra.mxu0 %v2133
      %2151 = vmatpush.bf16.msra.mxu0 %v2132
      %2152 = vmatpush.bf16.msra.mxu0 %v2131
      %2153 = vmatpush.bf16.msra.mxu0 %v2130
      %2154 = vmatmul.bf16.gmra.mxu0 %v2075
      %v2155 = vpop.f32.mrf.mxu0
      %v2156 = vadd.f32 %v2096, %v2155
      %v2157 = vpop.f32.mrf.mxu0
      %2158 = vdwg.mxu0
      %v2159 = vxor.u32 %v2156, 2147483648
      %v2160 = vmul.f32 %v2159, 1.442695
      %v2161 = vpow.pop %v2160
      %v2162 = vadd.f32 %v2161, 1.0
      %v2163 = vrcp.pop %v2162
      %v2164 = vmul.f32 %v2162, %v2163
      %v2165 = vsub.f32 1.0, %v2164
      %v2166 = vmul.f32 %v2163, %v2165
      %v2167 = vadd.f32 %v2163, %v2166
      %vm2168 = vweird.f32 %v2162
      %vm2169 = vweird.f32 %v2163
      %vm2170 = vmor %vm2168, %vm2169
      %v2171 = vsel %vm2170, %v2163, %v2167
      %v2172 = vand.u32 2147483647, %v2162
      %vm2173 = vcmp.eq.f32.partialorder %v2172, 8.507059e+37
      %v2174 = vand.u32 %v2162, 2147483648
      %v2175 = vor.u32 1.1754944e-38, %v2174
      %v2176 = vsel %vm2173, %v2175, %v2171
      %v2177 = vmul.f32 1.0, %v2176
      %v2178 = vmul.f32 %v2156, %v2177
      %v2179 = vpack.c.bf16 %v2178, %v2178
      %2180 = vst [vmem:[%s325] sm:$0x3] %v2179
      %p2181 = scmp.lt.s32.totalorder %s19, 1
      %s2182 = scalar_select %p2181, %s19, 1
      %s2183 = smul.addr %s2182, 8
      %s2184 = smul.addr %s2183, 4
      %s2185 = scalar_lea.vmem %s3, %s2184
      %p2186 = scmp.lt.s32.totalorder %s19, 1
      %s2187 = scalar_select %p2186, %s19, 1
      %s2188 = smul.addr %s2187, 8
      %s2189 = smul.addr %s2188, 4
      %s2190 = scalar_lea.vmem %s4, %s2189
      %p2191 = scmp.lt.s32.totalorder %s19, 1
      %s2192 = scalar_select %p2191, %s19, 1
      %s2193 = smul.addr %s2192, 2
      %s2194 = smul.addr %s2193, 4
      %s2195 = scalar_lea.vmem %s5, %s2194
      %p2196 = scmp.lt.s32.totalorder %s19, 1
      %s2197 = scalar_select %p2196, %s19, 1
      %s2198 = smul.addr %s2197, 2
      %s2199 = smul.addr %s2198, 4
      %s2200 = scalar_lea.vmem %s6, %s2199
      %p2201 = scmp.lt.s32.totalorder %s19, 1
      %s2202 = scalar_select %p2201, %s19, 1
      %s2203 = smul.addr %s2202, 2
      %s2204 = scalar_lea.vmem %s7, %s2203
      // Predicated region
      $region33: #{_backbone_forward.1} parent=31 // pred_check
        %p2205 = pneg %p105
      $region34: #{_backbone_forward.1} parent=31 // pred_check_branch
        %2207 = sbr.rel (%p2205) target = $region36
      $region35: #{_backbone_forward.1} parent=31 // pred_region
        _
      $region36: #{_backbone_forward.1} parent=31 // pred_fallthru
        _
      // Predicated region
      $region37: #{_backbone_forward.1} parent=31 // pred_check
        %p2208 = pneg %p131
      $region38: #{_backbone_forward.1} parent=31 // pred_check_branch
        %2210 = sbr.rel (%p2208) target = $region40
      $region39: #{_backbone_forward.1} parent=31 // pred_region
        _
      $region40: #{_backbone_forward.1} parent=31 // pred_fallthru
        _
      // Predicated region
      $region41: #{_backbone_forward.1} parent=31 // pred_check
        %p2211 = pneg %p157
      $region42: #{_backbone_forward.1} parent=31 // pred_check_branch
        %2213 = sbr.rel (%p2211) target = $region44
      $region43: #{_backbone_forward.1} parent=31 // pred_region
        _
      $region44: #{_backbone_forward.1} parent=31 // pred_fallthru
        _
      // Predicated region
      $region45: #{_backbone_forward.1} parent=31 // pred_check
        %p2214 = pneg %p183
      $region46: #{_backbone_forward.1} parent=31 // pred_check_branch
        %2216 = sbr.rel (%p2214) target = $region48
      $region47: #{_backbone_forward.1} parent=31 // pred_region
        _
      $region48: #{_backbone_forward.1} parent=31 // pred_fallthru
        _
      // Predicated region
      $region49: #{_backbone_forward.1} parent=31 // pred_check
        %p2217 = pneg %p209
      $region50: #{_backbone_forward.1} parent=31 // pred_check_branch
        %2219 = sbr.rel (%p2217) target = $region52
      $region51: #{_backbone_forward.1} parent=31 // pred_region
        _
      $region52: #{_backbone_forward.1} parent=31 // pred_fallthru
        _
    $region32: #{_backbone_forward.1} parent=5 // pred_fallthru
      _
    %p2220 = scmp.le.s32.totalorder 2, %s14
    // Predicated region
    $region53: #{_backbone_forward.1} parent=5 // pred_check
      %p2221 = pneg %p2220
    $region54: #{_backbone_forward.1} parent=5 // pred_check_branch
      %2223 = sbr.rel (%p2221) target = $region56
    $region55: #{_backbone_forward.1} parent=5 // pred_region
      %s2224 = ssub.s32 %s14, 2
      // Predicated region
      $region57: #{_backbone_forward.1} parent=55 // pred_check
        %p2225 = pneg %p111
      $region58: #{_backbone_forward.1} parent=55 // pred_check_branch
        %2227 = sbr.rel (%p2225) target = $region60
      $region59: #{_backbone_forward.1} parent=55 // pred_region
        %p2228 = scmp.lt.s32.totalorder %s20, 1
        %s2229 = scalar_select %p2228, %s20, 1
        %s2230 = smul.addr %s2229, 8
        %s2231 = smul.addr %s2230, 4
        %s2232 = scalar_lea.vmem %s3, %s2231
      $region60: #{_backbone_forward.1} parent=55 // pred_fallthru
        _
      // Predicated region
      $region61: #{_backbone_forward.1} parent=55 // pred_check
        %p2233 = pneg %p137
      $region62: #{_backbone_forward.1} parent=55 // pred_check_branch
        %2235 = sbr.rel (%p2233) target = $region64
      $region63: #{_backbone_forward.1} parent=55 // pred_region
        %p2236 = scmp.lt.s32.totalorder %s20, 1
        %s2237 = scalar_select %p2236, %s20, 1
        %s2238 = smul.addr %s2237, 8
        %s2239 = smul.addr %s2238, 4
        %s2240 = scalar_lea.vmem %s4, %s2239
      $region64: #{_backbone_forward.1} parent=55 // pred_fallthru
        _
      // Predicated region
      $region65: #{_backbone_forward.1} parent=55 // pred_check
        %p2241 = pneg %p163
      $region66: #{_backbone_forward.1} parent=55 // pred_check_branch
        %2243 = sbr.rel (%p2241) target = $region68
      $region67: #{_backbone_forward.1} parent=55 // pred_region
        %p2244 = scmp.lt.s32.totalorder %s20, 1
        %s2245 = scalar_select %p2244, %s20, 1
        %s2246 = smul.addr %s2245, 2
        %s2247 = smul.addr %s2246, 4
        %s2248 = scalar_lea.vmem %s5, %s2247
      $region68: #{_backbone_forward.1} parent=55 // pred_fallthru
        _
      // Predicated region
      $region69: #{_backbone_forward.1} parent=55 // pred_check
        %p2249 = pneg %p189
      $region70: #{_backbone_forward.1} parent=55 // pred_check_branch
        %2251 = sbr.rel (%p2249) target = $region72
      $region71: #{_backbone_forward.1} parent=55 // pred_region
        %p2252 = scmp.lt.s32.totalorder %s20, 1
        %s2253 = scalar_select %p2252, %s20, 1
        %s2254 = smul.addr %s2253, 2
        %s2255 = smul.addr %s2254, 4
        %s2256 = scalar_lea.vmem %s6, %s2255
      $region72: #{_backbone_forward.1} parent=55 // pred_fallthru
        _
      // Predicated region
      $region73: #{_backbone_forward.1} parent=55 // pred_check
        %p2257 = pneg %p215
      $region74: #{_backbone_forward.1} parent=55 // pred_check_branch
        %2259 = sbr.rel (%p2257) target = $region76
      $region75: #{_backbone_forward.1} parent=55 // pred_region
        %p2260 = scmp.lt.s32.totalorder %s20, 1
        %s2261 = scalar_select %p2260, %s20, 1
        %s2262 = smul.addr %s2261, 2
        %s2263 = scalar_lea.vmem %s7, %s2262
      $region76: #{_backbone_forward.1} parent=55 // pred_fallthru
        _
    $region56: #{_backbone_forward.1} parent=5 // pred_fallthru
      _
  $region6: #{_backbone_forward.1} parent=0 // loop_footer
    %s18 = sadd.s32 1, %s14
  $region7: #{_backbone_forward.1} parent=0 // loop_footer_branch
    %13 = sbr.rel target = $region3
  $region8: #{_backbone_forward.1} parent=0 // loop_exit
    _

</llo_original>
